<compile_context>
chip_gen: v6e
topology: v6e:2x2x1
jax: 0.10.0
libtpu: 0.0.40
codegen_flags: <defaults>
</compile_context>

<pallas_src>
import jax
import jax.numpy as jnp
from jax.experimental import pallas as pl
from jax.experimental.pallas import tpu as pltpu


def _group_norm(y, gamma, beta, num_groups, eps):
    """GroupNorm over a (B, HW, C) channel-last tile (PyTorch biased variance).

    Per-image, per-group stats via static lane slices; plain scalar reductions
    plus rsqrt (EUP).  No iota masks, no full-tile accumulators.
    """
    B, HW, C = y.shape
    G = C // num_groups
    parts = []
    for g in range(num_groups):
        yg = y[:, :, g * G:(g + 1) * G]
        mu = jnp.mean(yg, axis=(1, 2), keepdims=True)            # (B, 1, 1)
        d = yg - mu
        var = jnp.mean(d * d, axis=(1, 2), keepdims=True)        # (B, 1, 1)
        parts.append(d * jax.lax.rsqrt(var + eps))
    return jnp.concatenate(parts, axis=-1) * gamma + beta


def _make_basic_block_kernel(stride, B, Cin, Cout, Ho, Wo, pad_shortcut, padc,
                             num_groups=2, eps=1e-5):
    HW = Ho * Wo
    # conv1 tap (dy, dx) -> (row offset, col offset, channel-slab index) inside
    # the merged input slab; every tap is a contiguous static slice.
    taps = []
    for dy in range(3):
        for dx in range(3):
            if stride == 1:
                taps.append((dy, dx, 0))
            else:  # stride == 2: row/col parity slabs merged along channels
                taps.append((dy // 2, dx // 2, (dy % 2) * 2 + (dx % 2)))

    def kernel(x_ref, w1_ref, w2_ref, gb_ref, o_ref, pad_ref):
        # x_ref  : (B, Hs, Ws, Cs) f32   (Cs = Cin or 4*Cin)
        # w1_ref : (9*Cin, Cout) bf16 ;  w2_ref : (9*Cout, Cout) bf16
        # gb_ref : (4, Cout) f32 = [gamma1, beta1, gamma2, beta2]
        # o_ref  : (B, Cout, HW)          (lane dim = HW, lane-dense)
        # pad_ref: (B, Ho+2, Wo+2, Cout) bf16 scratch (conv2 spatial pad)
        g1 = gb_ref[0:1, :].reshape(1, 1, Cout)
        b1 = gb_ref[1:2, :].reshape(1, 1, Cout)
        g2 = gb_ref[2:3, :].reshape(1, 1, Cout)
        b2 = gb_ref[3:4, :].reshape(1, 1, Cout)

        # ---- conv1: fold the 9 taps into K (im2col) -> one MXU matmul ----
        cols = []
        for (ro, co, si) in taps:
            win = x_ref[:, ro:ro + Ho, co:co + Wo, si * Cin:(si + 1) * Cin]
            cols.append(win.reshape(B * HW, Cin).astype(jnp.bfloat16))
        im1 = jnp.concatenate(cols, axis=1)                      # (B*HW, 9*Cin)
        acc1 = jnp.dot(im1, w1_ref[...], preferred_element_type=jnp.float32)
        h1 = jnp.maximum(
            _group_norm(acc1.reshape(B, HW, Cout), g1, b1, num_groups, eps), 0.0)

        # ---- spatial zero-pad of h1 for conv2: interior overwritten every
        # step; only the 1-wide border needs clearing (cheap, and correct even
        # when the "parallel" grid axis is split across TensorCores). ----
        zr = jnp.zeros((B, 1, Wo + 2, Cout), pad_ref.dtype)
        zc = jnp.zeros((B, Ho, 1, Cout), pad_ref.dtype)
        pad_ref[:, 0:1, :, :] = zr
        pad_ref[:, Ho + 1:Ho + 2, :, :] = zr
        pad_ref[:, 1:Ho + 1, 0:1, :] = zc
        pad_ref[:, 1:Ho + 1, Wo + 1:Wo + 2, :] = zc
        pad_ref[:, 1:Ho + 1, 1:Wo + 1, :] = (
            h1.reshape(B, Ho, Wo, Cout).astype(pad_ref.dtype))

        # ---- conv2 (3x3, stride 1): im2col -> one MXU matmul ----
        cols2 = []
        for dy in range(3):
            for dx in range(3):
                win = pad_ref[:, dy:dy + Ho, dx:dx + Wo, :]
                cols2.append(win.reshape(B * HW, Cout))
        im2 = jnp.concatenate(cols2, axis=1)                     # (B*HW, 9*Cout)
        acc2 = jnp.dot(im2, w2_ref[...], preferred_element_type=jnp.float32)
        h2 = _group_norm(acc2.reshape(B, HW, Cout), g2, b2, num_groups, eps)

        # ---- shortcut add (f32, channel-last, static lane slices), ReLU,
        # then ONE transpose and ONE lane-dense (B, Cout, HW) store. ----
        if pad_shortcut:
            # x[:, :, ::2, ::2] == odd/odd parity channel slab; the channel
            # zero-pad is a lane concat around it (no selection matmuls).
            sc = x_ref[:, 0:Ho, 0:Wo, 3 * Cin:4 * Cin].reshape(B, HW, Cin)
            hi = Cout - padc - Cin
            pieces = []
            if padc > 0:
                pieces.append(jnp.zeros((B, HW, padc), jnp.float32))
            pieces.append(sc)
            if hi > 0:
                pieces.append(jnp.zeros((B, HW, hi), jnp.float32))
            h2 = h2 + jnp.concatenate(pieces, axis=-1)
        else:
            # identity shortcut (stride 1, Cin == Cout): center of padded slab.
            h2 = h2 + x_ref[:, 1:Ho + 1, 1:Wo + 1, :].reshape(B, HW, Cin)

        out = jnp.maximum(h2, 0.0)                               # (B, HW, Cout)
        o_ref[...] = jnp.transpose(out, (0, 2, 1)).astype(o_ref.dtype)

    return kernel


def basic_block_forward(x, w1, g1, b1, w2, g2, b2, stride, block_b=None):
    """Pallas BasicBlock forward.  x: (N, Cin, H, W) f32 NCHW -> (N, Cout, Ho, Wo)."""
    N, Cin, H, W = x.shape
    Cout = w1.shape[0]
    assert w1.shape == (Cout, Cin, 3, 3) and w2.shape == (Cout, Cout, 3, 3)
    Ho = (H - 1) // stride + 1
    Wo = (W - 1) // stride + 1
    HW = Ho * Wo
    pad_shortcut = (stride != 1) or (Cin != Cout)
    padc = Cout // 4 if pad_shortcut else 0
    if pad_shortcut:
        # the PyTorch lambda only type-checks in this configuration
        assert stride == 2 and Cin + 2 * padc == Cout
        assert H % 2 == 0 and W % 2 == 0

    # Batch block: amortizes the fixed per-step cost; keep the grid >= 2 steps
    # when N >= 2 so ("parallel",) still spreads work over both TCs (v7x).
    if block_b is None:
        block_b = max(1, min(8, N // 2))
    n_pad = (-(-N // block_b)) * block_b

    # ---- wrapper-side layout plumbing (pure data movement, no compute) ----
    x_cl = jnp.transpose(x, (0, 2, 3, 1)).astype(jnp.float32)    # NHWC
    if n_pad != N:
        x_cl = jnp.pad(x_cl, ((0, n_pad - N), (0, 0), (0, 0), (0, 0)))
    xpad = jnp.pad(x_cl, ((0, 0), (1, 1), (1, 1), (0, 0)))       # spatial zero pad
    if stride == 1:
        slab = xpad                                              # (n, Ho+2, Wo+2, Cin)
    else:
        # merge the 4 row/col parity slabs along channels: every stride-2 conv
        # tap and the shortcut become contiguous static slices in the kernel.
        slab = jnp.concatenate(
            [xpad[:, p::2, q::2, :] for p in (0, 1) for q in (0, 1)], axis=-1)

    w1m = jnp.transpose(w1, (2, 3, 1, 0)).reshape(9 * Cin, Cout).astype(jnp.bfloat16)
    w2m = jnp.transpose(w2, (2, 3, 1, 0)).reshape(9 * Cout, Cout).astype(jnp.bfloat16)
    gb = jnp.stack([g1, b1, g2, b2], axis=0).astype(jnp.float32)   # (4, Cout)

    kernel = _make_basic_block_kernel(stride, block_b, Cin, Cout, Ho, Wo,
                                      pad_shortcut, padc)

    _, Hs, Ws, Cs = slab.shape
    out = pl.pallas_call(
        kernel,
        out_shape=jax.ShapeDtypeStruct((n_pad, Cout, HW), x.dtype),
        grid_spec=pltpu.PrefetchScalarGridSpec(
            num_scalar_prefetch=0,
            grid=(n_pad // block_b,),          # one fused BasicBlock per B images
            in_specs=[
                pl.BlockSpec((block_b, Hs, Ws, Cs), lambda n: (n, 0, 0, 0)),
                pl.BlockSpec((9 * Cin, Cout), lambda n: (0, 0)),
                pl.BlockSpec((9 * Cout, Cout), lambda n: (0, 0)),
                pl.BlockSpec((4, Cout), lambda n: (0, 0)),
            ],
            out_specs=pl.BlockSpec((block_b, Cout, HW), lambda n: (n, 0, 0)),
            scratch_shapes=[pltpu.VMEM((block_b, Ho + 2, Wo + 2, Cout),
                                       jnp.bfloat16)]),
        compiler_params=pltpu.CompilerParams(
            dimension_semantics=("parallel",)),   # batch blocks shard across TCs
    )(slab, w1m, w2m, gb)

    return out[:N].reshape(N, Cout, Ho, Wo)


# ----------------------------- pure-JAX reference -----------------------------
def _reference_basic_block(x, w1, g1, b1, w2, g2, b2, stride):
    def conv3x3(inp, w, s):
        return jax.lax.conv_general_dilated(
            inp, w, window_strides=(s, s), padding=((1, 1), (1, 1)),
            dimension_numbers=("NCHW", "OIHW", "NCHW"),
            precision=jax.lax.Precision.HIGHEST)

    def gn(inp, gamma, beta, groups=2, eps=1e-5):
        N, C, H, W = inp.shape
        g = inp.reshape(N, groups, C // groups, H, W)
        mu = g.mean(axis=(2, 3, 4), keepdims=True)
        var = ((g - mu) ** 2).mean(axis=(2, 3, 4), keepdims=True)
        out = ((g - mu) / jnp.sqrt(var + eps)).reshape(N, C, H, W)
        return out * gamma.reshape(1, C, 1, 1) + beta.reshape(1, C, 1, 1)

    out = jax.nn.relu(gn(conv3x3(x, w1, stride), g1, b1))
    out = gn(conv3x3(out, w2, 1), g2, b2)
    Cin, Cout = x.shape[1], w1.shape[0]
    if stride != 1 or Cin != Cout:
        p = Cout // 4
        sc = jnp.pad(x[:, :, ::2, ::2], ((0, 0), (p, p), (0, 0), (0, 0)))
    else:
        sc = x
    return jax.nn.relu(out + sc)


if __name__ == "__main__":
    key = jax.random.PRNGKey(0)
    ks = jax.random.split(key, 10)

    def check(out, ref, name):
        assert out.shape == ref.shape, (name, out.shape, ref.shape)
        err = float(jnp.max(jnp.abs(out - ref)))
        # bf16 MXU operands (f32 accumulation / GN / residual) -> bf16-level tolerance.
        assert jnp.allclose(out, ref, atol=5e-2, rtol=2e-2), f"{name}: max abs err {err}"

    # Shared params for the downsampling block: Cin=4 -> Cout=8.
    Cin, Cout = 4, 8
    w1 = jax.random.normal(ks[1], (Cout, Cin, 3, 3), jnp.float32) * 0.2
    w2 = jax.random.normal(ks[2], (Cout, Cout, 3, 3), jnp.float32) * 0.2
    g1 = 1.0 + 0.1 * jax.random.normal(ks[3], (Cout,), jnp.float32)
    b1 = 0.1 * jax.random.normal(ks[4], (Cout,), jnp.float32)
    g2 = 1.0 + 0.1 * jax.random.normal(ks[5], (Cout,), jnp.float32)
    b2 = 0.1 * jax.random.normal(ks[6], (Cout,), jnp.float32)

    # 1) Downsampling BasicBlock (option-A pad shortcut): stride 2, 2x4x16x16 -> 2x8x8x8.
    x = jax.random.normal(ks[0], (2, Cin, 16, 16), jnp.float32)
    out = jax.block_until_ready(basic_block_forward(x, w1, g1, b1, w2, g2, b2, 2))
    check(out, _reference_basic_block(x, w1, g1, b1, w2, g2, b2, 2), "stride2")

    # 2) Identity-shortcut BasicBlock: stride 1, Cin=Cout=8, 2x8x8x8.
    x2 = jax.random.normal(ks[7], (2, Cout, 8, 8), jnp.float32)
    out2 = jax.block_until_ready(basic_block_forward(x2, w2, g1, b1, w2, g2, b2, 1))
    check(out2, _reference_basic_block(x2, w2, g1, b1, w2, g2, b2, 1), "stride1")

    # 3) Batched grid path (block_b > 1): stride 2, 8x4x16x16 -> blocks of 4 images.
    x3 = jax.random.normal(ks[8], (8, Cin, 16, 16), jnp.float32)
    out3 = jax.block_until_ready(basic_block_forward(x3, w1, g1, b1, w2, g2, b2, 2))
    check(out3, _reference_basic_block(x3, w1, g1, b1, w2, g2, b2, 2), "batched")

    print("KERNEL_OK")
</pallas_src>

<mosaic_0001>
module attributes {stable_mosaic.version = 11 : i64} {
  func.func @kernel(%arg0: i32, %arg1: memref<1x9x9x16xf32, #tpu.memory_space<vmem>>, %arg2: memref<36x8xbf16, #tpu.memory_space<vmem>>, %arg3: memref<72x8xbf16, #tpu.memory_space<vmem>>, %arg4: memref<4x8xf32, #tpu.memory_space<vmem>>, %arg5: memref<1x8x64xf32, #tpu.memory_space<vmem>>, %arg6: memref<1x10x10x8xbf16, #tpu.memory_space<vmem>>) attributes {dimension_semantics = [#tpu.dimension_semantics<parallel>], iteration_bounds = array<i64: 2>, scalar_prefetch = 0 : i64, scratch_operands = 1 : i64, tpu.core_type = #tpu.core_type<tc>, window_params = [{transform_indices = @transform_0, window_bounds = array<i64: 1, 9, 9, 16>}, {pipeline_mode = #tpu.pipeline_mode<synchronous>, transform_indices = @transform_1, window_bounds = array<i64: 36, 8>}, {pipeline_mode = #tpu.pipeline_mode<synchronous>, transform_indices = @transform_2, window_bounds = array<i64: 72, 8>}, {pipeline_mode = #tpu.pipeline_mode<synchronous>, transform_indices = @transform_3, window_bounds = array<i64: 4, 8>}, {transform_indices = @transform_4, window_bounds = array<i64: 1, 8, 64>}]} {
    %c0 = arith.constant 0 : index
    %c0_0 = arith.constant 0 : index
    %0 = vector.load %arg4[%c0, %c0_0] : memref<4x8xf32, #tpu.memory_space<vmem>>, vector<1x8xf32>
    %1 = vector.shape_cast %0 : vector<1x8xf32> to vector<1x1x8xf32>
    %c1 = arith.constant 1 : index
    %c0_1 = arith.constant 0 : index
    %2 = vector.load %arg4[%c1, %c0_1] : memref<4x8xf32, #tpu.memory_space<vmem>>, vector<1x8xf32>
    %3 = vector.shape_cast %2 : vector<1x8xf32> to vector<1x1x8xf32>
    %c2 = arith.constant 2 : index
    %c0_2 = arith.constant 0 : index
    %4 = vector.load %arg4[%c2, %c0_2] : memref<4x8xf32, #tpu.memory_space<vmem>>, vector<1x8xf32>
    %5 = vector.shape_cast %4 : vector<1x8xf32> to vector<1x1x8xf32>
    %c3 = arith.constant 3 : index
    %c0_3 = arith.constant 0 : index
    %6 = vector.load %arg4[%c3, %c0_3] : memref<4x8xf32, #tpu.memory_space<vmem>>, vector<1x8xf32>
    %7 = vector.shape_cast %6 : vector<1x8xf32> to vector<1x1x8xf32>
    %c0_4 = arith.constant 0 : index
    %c0_5 = arith.constant 0 : index
    %c0_6 = arith.constant 0 : index
    %c0_7 = arith.constant 0 : index
    %8 = vector.load %arg1[%c0_4, %c0_5, %c0_6, %c0_7] : memref<1x9x9x16xf32, #tpu.memory_space<vmem>>, vector<1x8x8x4xf32>
    %9 = vector.shape_cast %8 : vector<1x8x8x4xf32> to vector<64x4xf32>
    %10 = arith.truncf %9 : vector<64x4xf32> to vector<64x4xbf16>
    %c0_8 = arith.constant 0 : index
    %c0_9 = arith.constant 0 : index
    %c0_10 = arith.constant 0 : index
    %c4 = arith.constant 4 : index
    %11 = vector.load %arg1[%c0_8, %c0_9, %c0_10, %c4] : memref<1x9x9x16xf32, #tpu.memory_space<vmem>>, vector<1x8x8x4xf32>
    %12 = vector.shape_cast %11 : vector<1x8x8x4xf32> to vector<64x4xf32>
    %13 = arith.truncf %12 : vector<64x4xf32> to vector<64x4xbf16>
    %c0_11 = arith.constant 0 : index
    %c0_12 = arith.constant 0 : index
    %c1_13 = arith.constant 1 : index
    %c0_14 = arith.constant 0 : index
    %14 = vector.load %arg1[%c0_11, %c0_12, %c1_13, %c0_14] : memref<1x9x9x16xf32, #tpu.memory_space<vmem>>, vector<1x8x8x4xf32>
    %15 = vector.shape_cast %14 : vector<1x8x8x4xf32> to vector<64x4xf32>
    %16 = arith.truncf %15 : vector<64x4xf32> to vector<64x4xbf16>
    %c0_15 = arith.constant 0 : index
    %c0_16 = arith.constant 0 : index
    %c0_17 = arith.constant 0 : index
    %c8 = arith.constant 8 : index
    %17 = vector.load %arg1[%c0_15, %c0_16, %c0_17, %c8] : memref<1x9x9x16xf32, #tpu.memory_space<vmem>>, vector<1x8x8x4xf32>
    %18 = vector.shape_cast %17 : vector<1x8x8x4xf32> to vector<64x4xf32>
    %19 = arith.truncf %18 : vector<64x4xf32> to vector<64x4xbf16>
    %c0_18 = arith.constant 0 : index
    %c0_19 = arith.constant 0 : index
    %c0_20 = arith.constant 0 : index
    %c12 = arith.constant 12 : index
    %20 = vector.load %arg1[%c0_18, %c0_19, %c0_20, %c12] : memref<1x9x9x16xf32, #tpu.memory_space<vmem>>, vector<1x8x8x4xf32>
    %21 = vector.shape_cast %20 : vector<1x8x8x4xf32> to vector<64x4xf32>
    %22 = arith.truncf %21 : vector<64x4xf32> to vector<64x4xbf16>
    %c0_21 = arith.constant 0 : index
    %c0_22 = arith.constant 0 : index
    %c1_23 = arith.constant 1 : index
    %c8_24 = arith.constant 8 : index
    %23 = vector.load %arg1[%c0_21, %c0_22, %c1_23, %c8_24] : memref<1x9x9x16xf32, #tpu.memory_space<vmem>>, vector<1x8x8x4xf32>
    %24 = vector.shape_cast %23 : vector<1x8x8x4xf32> to vector<64x4xf32>
    %25 = arith.truncf %24 : vector<64x4xf32> to vector<64x4xbf16>
    %c0_25 = arith.constant 0 : index
    %c1_26 = arith.constant 1 : index
    %c0_27 = arith.constant 0 : index
    %c0_28 = arith.constant 0 : index
    %26 = vector.load %arg1[%c0_25, %c1_26, %c0_27, %c0_28] : memref<1x9x9x16xf32, #tpu.memory_space<vmem>>, vector<1x8x8x4xf32>
    %27 = vector.shape_cast %26 : vector<1x8x8x4xf32> to vector<64x4xf32>
    %28 = arith.truncf %27 : vector<64x4xf32> to vector<64x4xbf16>
    %c0_29 = arith.constant 0 : index
    %c1_30 = arith.constant 1 : index
    %c0_31 = arith.constant 0 : index
    %c4_32 = arith.constant 4 : index
    %29 = vector.load %arg1[%c0_29, %c1_30, %c0_31, %c4_32] : memref<1x9x9x16xf32, #tpu.memory_space<vmem>>, vector<1x8x8x4xf32>
    %30 = vector.shape_cast %29 : vector<1x8x8x4xf32> to vector<64x4xf32>
    %31 = arith.truncf %30 : vector<64x4xf32> to vector<64x4xbf16>
    %c0_33 = arith.constant 0 : index
    %c1_34 = arith.constant 1 : index
    %c1_35 = arith.constant 1 : index
    %c0_36 = arith.constant 0 : index
    %32 = vector.load %arg1[%c0_33, %c1_34, %c1_35, %c0_36] : memref<1x9x9x16xf32, #tpu.memory_space<vmem>>, vector<1x8x8x4xf32>
    %33 = vector.shape_cast %32 : vector<1x8x8x4xf32> to vector<64x4xf32>
    %34 = arith.truncf %33 : vector<64x4xf32> to vector<64x4xbf16>
    %35 = tpu.concatenate %10, %13, %16, %19, %22, %25, %28, %31, %34 in 1 : vector<64x4xbf16>, vector<64x4xbf16>, vector<64x4xbf16>, vector<64x4xbf16>, vector<64x4xbf16>, vector<64x4xbf16>, vector<64x4xbf16>, vector<64x4xbf16>, vector<64x4xbf16> -> vector<64x36xbf16>
    %c0_37 = arith.constant 0 : index
    %c0_38 = arith.constant 0 : index
    %36 = vector.load %arg2[%c0_37, %c0_38] : memref<36x8xbf16, #tpu.memory_space<vmem>>, vector<36x8xbf16>
    %cst = arith.constant dense<0.000000e+00> : vector<64x8xf32>
    %37 = tpu.matmul %35, %36, %cst {dimension_numbers = #tpu.dot_dimension_numbers<[1], [0], [0], [1], [0, 0, 1, 1], [], []>} : vector<64x36xbf16>, vector<36x8xbf16>, vector<64x8xf32> -> vector<64x8xf32>
    %38 = vector.shape_cast %37 : vector<64x8xf32> to vector<1x64x8xf32>
    %39 = vector.extract_strided_slice %38 {offsets = [0, 0, 0], sizes = [1, 64, 4], strides = [1, 1, 1]} : vector<1x64x8xf32> to vector<1x64x4xf32>
    %cst_39 = arith.constant dense<0.000000e+00> : vector<1xf32>
    %40 = vector.multi_reduction <add>, %39, %cst_39 [1, 2] : vector<1x64x4xf32> to vector<1xf32>
    %41 = vector.shape_cast %40 : vector<1xf32> to vector<1x1x1xf32>
    %cst_40 = arith.constant 2.560000e+02 : f32
    %42 = vector.broadcast %cst_40 : f32 to vector<1x1x1xf32>
    %43 = arith.divf %41, %42 : vector<1x1x1xf32>
    %44 = vector.broadcast %43 : vector<1x1x1xf32> to vector<1x64x4xf32>
    %45 = arith.subf %39, %44 : vector<1x64x4xf32>
    %46 = arith.mulf %45, %45 : vector<1x64x4xf32>
    %cst_41 = arith.constant dense<0.000000e+00> : vector<1xf32>
    %47 = vector.multi_reduction <add>, %46, %cst_41 [1, 2] : vector<1x64x4xf32> to vector<1xf32>
    %48 = vector.shape_cast %47 : vector<1xf32> to vector<1x1x1xf32>
    %cst_42 = arith.constant 2.560000e+02 : f32
    %49 = vector.broadcast %cst_42 : f32 to vector<1x1x1xf32>
    %50 = arith.divf %48, %49 : vector<1x1x1xf32>
    %cst_43 = arith.constant 9.99999974E-6 : f32
    %51 = vector.broadcast %cst_43 : f32 to vector<1x1x1xf32>
    %52 = arith.addf %50, %51 : vector<1x1x1xf32>
    %53 = math.rsqrt %52 : vector<1x1x1xf32>
    %54 = vector.broadcast %53 : vector<1x1x1xf32> to vector<1x64x4xf32>
    %55 = arith.mulf %45, %54 : vector<1x64x4xf32>
    %56 = vector.extract_strided_slice %38 {offsets = [0, 0, 4], sizes = [1, 64, 4], strides = [1, 1, 1]} : vector<1x64x8xf32> to vector<1x64x4xf32>
    %cst_44 = arith.constant dense<0.000000e+00> : vector<1xf32>
    %57 = vector.multi_reduction <add>, %56, %cst_44 [1, 2] : vector<1x64x4xf32> to vector<1xf32>
    %58 = vector.shape_cast %57 : vector<1xf32> to vector<1x1x1xf32>
    %cst_45 = arith.constant 2.560000e+02 : f32
    %59 = vector.broadcast %cst_45 : f32 to vector<1x1x1xf32>
    %60 = arith.divf %58, %59 : vector<1x1x1xf32>
    %61 = vector.broadcast %60 : vector<1x1x1xf32> to vector<1x64x4xf32>
    %62 = arith.subf %56, %61 : vector<1x64x4xf32>
    %63 = arith.mulf %62, %62 : vector<1x64x4xf32>
    %cst_46 = arith.constant dense<0.000000e+00> : vector<1xf32>
    %64 = vector.multi_reduction <add>, %63, %cst_46 [1, 2] : vector<1x64x4xf32> to vector<1xf32>
    %65 = vector.shape_cast %64 : vector<1xf32> to vector<1x1x1xf32>
    %cst_47 = arith.constant 2.560000e+02 : f32
    %66 = vector.broadcast %cst_47 : f32 to vector<1x1x1xf32>
    %67 = arith.divf %65, %66 : vector<1x1x1xf32>
    %cst_48 = arith.constant 9.99999974E-6 : f32
    %68 = vector.broadcast %cst_48 : f32 to vector<1x1x1xf32>
    %69 = arith.addf %67, %68 : vector<1x1x1xf32>
    %70 = math.rsqrt %69 : vector<1x1x1xf32>
    %71 = vector.broadcast %70 : vector<1x1x1xf32> to vector<1x64x4xf32>
    %72 = arith.mulf %62, %71 : vector<1x64x4xf32>
    %73 = tpu.concatenate %55, %72 in 2 : vector<1x64x4xf32>, vector<1x64x4xf32> -> vector<1x64x8xf32>
    %74 = vector.broadcast %1 : vector<1x1x8xf32> to vector<1x64x8xf32>
    %75 = arith.mulf %73, %74 : vector<1x64x8xf32>
    %76 = vector.broadcast %3 : vector<1x1x8xf32> to vector<1x64x8xf32>
    %77 = arith.addf %75, %76 : vector<1x64x8xf32>
    %cst_49 = arith.constant 0.000000e+00 : f32
    %78 = vector.broadcast %cst_49 : f32 to vector<1x64x8xf32>
    %79 = arith.maximumf %77, %78 : vector<1x64x8xf32>
    %cst_50 = arith.constant 0.000000e+00 : bf16
    %80 = vector.broadcast %cst_50 : bf16 to vector<1x1x10x8xbf16>
    %cst_51 = arith.constant 0.000000e+00 : bf16
    %81 = vector.broadcast %cst_51 : bf16 to vector<1x8x1x8xbf16>
    %c0_52 = arith.constant 0 : index
    %c0_53 = arith.constant 0 : index
    %c0_54 = arith.constant 0 : index
    %c0_55 = arith.constant 0 : index
    %82 = vector.load %arg6[%c0_52, %c0_53, %c0_54, %c0_55] : memref<1x10x10x8xbf16, #tpu.memory_space<vmem>>, vector<1x1x10x8xbf16>
    tpu.vector_store %arg6[%c0_52, %c0_53, %c0_54, %c0_55], %80 {strides = array<i32>} : memref<1x10x10x8xbf16, #tpu.memory_space<vmem>>, vector<1x1x10x8xbf16>,
    %c0_56 = arith.constant 0 : index
    %c9 = arith.constant 9 : index
    %c0_57 = arith.constant 0 : index
    %c0_58 = arith.constant 0 : index
    %83 = vector.load %arg6[%c0_56, %c9, %c0_57, %c0_58] : memref<1x10x10x8xbf16, #tpu.memory_space<vmem>>, vector<1x1x10x8xbf16>
    tpu.vector_store %arg6[%c0_56, %c9, %c0_57, %c0_58], %80 {strides = array<i32>} : memref<1x10x10x8xbf16, #tpu.memory_space<vmem>>, vector<1x1x10x8xbf16>,
    %c0_59 = arith.constant 0 : index
    %c1_60 = arith.constant 1 : index
    %c0_61 = arith.constant 0 : index
    %c0_62 = arith.constant 0 : index
    %84 = vector.load %arg6[%c0_59, %c1_60, %c0_61, %c0_62] : memref<1x10x10x8xbf16, #tpu.memory_space<vmem>>, vector<1x8x1x8xbf16>
    tpu.vector_store %arg6[%c0_59, %c1_60, %c0_61, %c0_62], %81 {strides = array<i32>} : memref<1x10x10x8xbf16, #tpu.memory_space<vmem>>, vector<1x8x1x8xbf16>,
    %c0_63 = arith.constant 0 : index
    %c1_64 = arith.constant 1 : index
    %c9_65 = arith.constant 9 : index
    %c0_66 = arith.constant 0 : index
    %85 = vector.load %arg6[%c0_63, %c1_64, %c9_65, %c0_66] : memref<1x10x10x8xbf16, #tpu.memory_space<vmem>>, vector<1x8x1x8xbf16>
    tpu.vector_store %arg6[%c0_63, %c1_64, %c9_65, %c0_66], %81 {strides = array<i32>} : memref<1x10x10x8xbf16, #tpu.memory_space<vmem>>, vector<1x8x1x8xbf16>,
    %86 = vector.shape_cast %79 : vector<1x64x8xf32> to vector<1x8x8x8xf32>
    %87 = arith.truncf %86 : vector<1x8x8x8xf32> to vector<1x8x8x8xbf16>
    %c0_67 = arith.constant 0 : index
    %c1_68 = arith.constant 1 : index
    %c1_69 = arith.constant 1 : index
    %c0_70 = arith.constant 0 : index
    %88 = vector.load %arg6[%c0_67, %c1_68, %c1_69, %c0_70] : memref<1x10x10x8xbf16, #tpu.memory_space<vmem>>, vector<1x8x8x8xbf16>
    tpu.vector_store %arg6[%c0_67, %c1_68, %c1_69, %c0_70], %87 {strides = array<i32>} : memref<1x10x10x8xbf16, #tpu.memory_space<vmem>>, vector<1x8x8x8xbf16>,
    %c0_71 = arith.constant 0 : index
    %c0_72 = arith.constant 0 : index
    %c0_73 = arith.constant 0 : index
    %c0_74 = arith.constant 0 : index
    %89 = vector.load %arg6[%c0_71, %c0_72, %c0_73, %c0_74] : memref<1x10x10x8xbf16, #tpu.memory_space<vmem>>, vector<1x8x8x8xbf16>
    %90 = vector.shape_cast %89 : vector<1x8x8x8xbf16> to vector<64x8xbf16>
    %c0_75 = arith.constant 0 : index
    %c0_76 = arith.constant 0 : index
    %c1_77 = arith.constant 1 : index
    %c0_78 = arith.constant 0 : index
    %91 = vector.load %arg6[%c0_75, %c0_76, %c1_77, %c0_78] : memref<1x10x10x8xbf16, #tpu.memory_space<vmem>>, vector<1x8x8x8xbf16>
    %92 = vector.shape_cast %91 : vector<1x8x8x8xbf16> to vector<64x8xbf16>
    %c0_79 = arith.constant 0 : index
    %c0_80 = arith.constant 0 : index
    %c2_81 = arith.constant 2 : index
    %c0_82 = arith.constant 0 : index
    %93 = vector.load %arg6[%c0_79, %c0_80, %c2_81, %c0_82] : memref<1x10x10x8xbf16, #tpu.memory_space<vmem>>, vector<1x8x8x8xbf16>
    %94 = vector.shape_cast %93 : vector<1x8x8x8xbf16> to vector<64x8xbf16>
    %c0_83 = arith.constant 0 : index
    %c1_84 = arith.constant 1 : index
    %c0_85 = arith.constant 0 : index
    %c0_86 = arith.constant 0 : index
    %95 = vector.load %arg6[%c0_83, %c1_84, %c0_85, %c0_86] : memref<1x10x10x8xbf16, #tpu.memory_space<vmem>>, vector<1x8x8x8xbf16>
    %96 = vector.shape_cast %95 : vector<1x8x8x8xbf16> to vector<64x8xbf16>
    %c0_87 = arith.constant 0 : index
    %c1_88 = arith.constant 1 : index
    %c1_89 = arith.constant 1 : index
    %c0_90 = arith.constant 0 : index
    %97 = vector.load %arg6[%c0_87, %c1_88, %c1_89, %c0_90] : memref<1x10x10x8xbf16, #tpu.memory_space<vmem>>, vector<1x8x8x8xbf16>
    %98 = vector.shape_cast %97 : vector<1x8x8x8xbf16> to vector<64x8xbf16>
    %c0_91 = arith.constant 0 : index
    %c1_92 = arith.constant 1 : index
    %c2_93 = arith.constant 2 : index
    %c0_94 = arith.constant 0 : index
    %99 = vector.load %arg6[%c0_91, %c1_92, %c2_93, %c0_94] : memref<1x10x10x8xbf16, #tpu.memory_space<vmem>>, vector<1x8x8x8xbf16>
    %100 = vector.shape_cast %99 : vector<1x8x8x8xbf16> to vector<64x8xbf16>
    %c0_95 = arith.constant 0 : index
    %c2_96 = arith.constant 2 : index
    %c0_97 = arith.constant 0 : index
    %c0_98 = arith.constant 0 : index
    %101 = vector.load %arg6[%c0_95, %c2_96, %c0_97, %c0_98] : memref<1x10x10x8xbf16, #tpu.memory_space<vmem>>, vector<1x8x8x8xbf16>
    %102 = vector.shape_cast %101 : vector<1x8x8x8xbf16> to vector<64x8xbf16>
    %c0_99 = arith.constant 0 : index
    %c2_100 = arith.constant 2 : index
    %c1_101 = arith.constant 1 : index
    %c0_102 = arith.constant 0 : index
    %103 = vector.load %arg6[%c0_99, %c2_100, %c1_101, %c0_102] : memref<1x10x10x8xbf16, #tpu.memory_space<vmem>>, vector<1x8x8x8xbf16>
    %104 = vector.shape_cast %103 : vector<1x8x8x8xbf16> to vector<64x8xbf16>
    %c0_103 = arith.constant 0 : index
    %c2_104 = arith.constant 2 : index
    %c2_105 = arith.constant 2 : index
    %c0_106 = arith.constant 0 : index
    %105 = vector.load %arg6[%c0_103, %c2_104, %c2_105, %c0_106] : memref<1x10x10x8xbf16, #tpu.memory_space<vmem>>, vector<1x8x8x8xbf16>
    %106 = vector.shape_cast %105 : vector<1x8x8x8xbf16> to vector<64x8xbf16>
    %107 = tpu.concatenate %90, %92, %94, %96, %98, %100, %102, %104, %106 in 1 : vector<64x8xbf16>, vector<64x8xbf16>, vector<64x8xbf16>, vector<64x8xbf16>, vector<64x8xbf16>, vector<64x8xbf16>, vector<64x8xbf16>, vector<64x8xbf16>, vector<64x8xbf16> -> vector<64x72xbf16>
    %c0_107 = arith.constant 0 : index
    %c0_108 = arith.constant 0 : index
    %108 = vector.load %arg3[%c0_107, %c0_108] : memref<72x8xbf16, #tpu.memory_space<vmem>>, vector<72x8xbf16>
    %cst_109 = arith.constant dense<0.000000e+00> : vector<64x8xf32>
    %109 = tpu.matmul %107, %108, %cst_109 {dimension_numbers = #tpu.dot_dimension_numbers<[1], [0], [0], [1], [0, 0, 1, 1], [], []>} : vector<64x72xbf16>, vector<72x8xbf16>, vector<64x8xf32> -> vector<64x8xf32>
    %110 = vector.shape_cast %109 : vector<64x8xf32> to vector<1x64x8xf32>
    %111 = vector.extract_strided_slice %110 {offsets = [0, 0, 0], sizes = [1, 64, 4], strides = [1, 1, 1]} : vector<1x64x8xf32> to vector<1x64x4xf32>
    %cst_110 = arith.constant dense<0.000000e+00> : vector<1xf32>
    %112 = vector.multi_reduction <add>, %111, %cst_110 [1, 2] : vector<1x64x4xf32> to vector<1xf32>
    %113 = vector.shape_cast %112 : vector<1xf32> to vector<1x1x1xf32>
    %cst_111 = arith.constant 2.560000e+02 : f32
    %114 = vector.broadcast %cst_111 : f32 to vector<1x1x1xf32>
    %115 = arith.divf %113, %114 : vector<1x1x1xf32>
    %116 = vector.broadcast %115 : vector<1x1x1xf32> to vector<1x64x4xf32>
    %117 = arith.subf %111, %116 : vector<1x64x4xf32>
    %118 = arith.mulf %117, %117 : vector<1x64x4xf32>
    %cst_112 = arith.constant dense<0.000000e+00> : vector<1xf32>
    %119 = vector.multi_reduction <add>, %118, %cst_112 [1, 2] : vector<1x64x4xf32> to vector<1xf32>
    %120 = vector.shape_cast %119 : vector<1xf32> to vector<1x1x1xf32>
    %cst_113 = arith.constant 2.560000e+02 : f32
    %121 = vector.broadcast %cst_113 : f32 to vector<1x1x1xf32>
    %122 = arith.divf %120, %121 : vector<1x1x1xf32>
    %cst_114 = arith.constant 9.99999974E-6 : f32
    %123 = vector.broadcast %cst_114 : f32 to vector<1x1x1xf32>
    %124 = arith.addf %122, %123 : vector<1x1x1xf32>
    %125 = math.rsqrt %124 : vector<1x1x1xf32>
    %126 = vector.broadcast %125 : vector<1x1x1xf32> to vector<1x64x4xf32>
    %127 = arith.mulf %117, %126 : vector<1x64x4xf32>
    %128 = vector.extract_strided_slice %110 {offsets = [0, 0, 4], sizes = [1, 64, 4], strides = [1, 1, 1]} : vector<1x64x8xf32> to vector<1x64x4xf32>
    %cst_115 = arith.constant dense<0.000000e+00> : vector<1xf32>
    %129 = vector.multi_reduction <add>, %128, %cst_115 [1, 2] : vector<1x64x4xf32> to vector<1xf32>
    %130 = vector.shape_cast %129 : vector<1xf32> to vector<1x1x1xf32>
    %cst_116 = arith.constant 2.560000e+02 : f32
    %131 = vector.broadcast %cst_116 : f32 to vector<1x1x1xf32>
    %132 = arith.divf %130, %131 : vector<1x1x1xf32>
    %133 = vector.broadcast %132 : vector<1x1x1xf32> to vector<1x64x4xf32>
    %134 = arith.subf %128, %133 : vector<1x64x4xf32>
    %135 = arith.mulf %134, %134 : vector<1x64x4xf32>
    %cst_117 = arith.constant dense<0.000000e+00> : vector<1xf32>
    %136 = vector.multi_reduction <add>, %135, %cst_117 [1, 2] : vector<1x64x4xf32> to vector<1xf32>
    %137 = vector.shape_cast %136 : vector<1xf32> to vector<1x1x1xf32>
    %cst_118 = arith.constant 2.560000e+02 : f32
    %138 = vector.broadcast %cst_118 : f32 to vector<1x1x1xf32>
    %139 = arith.divf %137, %138 : vector<1x1x1xf32>
    %cst_119 = arith.constant 9.99999974E-6 : f32
    %140 = vector.broadcast %cst_119 : f32 to vector<1x1x1xf32>
    %141 = arith.addf %139, %140 : vector<1x1x1xf32>
    %142 = math.rsqrt %141 : vector<1x1x1xf32>
    %143 = vector.broadcast %142 : vector<1x1x1xf32> to vector<1x64x4xf32>
    %144 = arith.mulf %134, %143 : vector<1x64x4xf32>
    %145 = tpu.concatenate %127, %144 in 2 : vector<1x64x4xf32>, vector<1x64x4xf32> -> vector<1x64x8xf32>
    %146 = vector.broadcast %5 : vector<1x1x8xf32> to vector<1x64x8xf32>
    %147 = arith.mulf %145, %146 : vector<1x64x8xf32>
    %148 = vector.broadcast %7 : vector<1x1x8xf32> to vector<1x64x8xf32>
    %149 = arith.addf %147, %148 : vector<1x64x8xf32>
    %c0_120 = arith.constant 0 : index
    %c0_121 = arith.constant 0 : index
    %c0_122 = arith.constant 0 : index
    %c12_123 = arith.constant 12 : index
    %150 = vector.load %arg1[%c0_120, %c0_121, %c0_122, %c12_123] : memref<1x9x9x16xf32, #tpu.memory_space<vmem>>, vector<1x8x8x4xf32>
    %151 = vector.shape_cast %150 : vector<1x8x8x4xf32> to vector<1x64x4xf32>
    %cst_124 = arith.constant 0.000000e+00 : f32
    %152 = vector.broadcast %cst_124 : f32 to vector<1x64x2xf32>
    %cst_125 = arith.constant 0.000000e+00 : f32
    %153 = vector.broadcast %cst_125 : f32 to vector<1x64x2xf32>
    %154 = tpu.concatenate %152, %151, %153 in 2 : vector<1x64x2xf32>, vector<1x64x4xf32>, vector<1x64x2xf32> -> vector<1x64x8xf32>
    %155 = arith.addf %149, %154 : vector<1x64x8xf32>
    %cst_126 = arith.constant 0.000000e+00 : f32
    %156 = vector.broadcast %cst_126 : f32 to vector<1x64x8xf32>
    %157 = arith.maximumf %155, %156 : vector<1x64x8xf32>
    %158 = tpu.transpose %157, [0, 2, 1] : vector<1x64x8xf32> -> vector<1x8x64xf32>
    %c0_127 = arith.constant 0 : index
    %c0_128 = arith.constant 0 : index
    %c0_129 = arith.constant 0 : index
    %159 = vector.load %arg5[%c0_127, %c0_128, %c0_129] : memref<1x8x64xf32, #tpu.memory_space<vmem>>, vector<1x8x64xf32>
    tpu.vector_store %arg5[%c0_127, %c0_128, %c0_129], %158 {strides = array<i32>} : memref<1x8x64xf32, #tpu.memory_space<vmem>>, vector<1x8x64xf32>,
    return
  }
  func.func @transform_0(%arg0: i32) -> (i32, i32, i32, i32) {
    %c0_i32 = arith.constant 0 : i32
    %c0_i32_0 = arith.constant 0 : i32
    %c0_i32_1 = arith.constant 0 : i32
    %c0_i32_2 = arith.constant 0 : i32
    return %arg0, %c0_i32, %c0_i32_0, %c0_i32_1 : i32, i32, i32, i32
  }
  func.func @transform_1(%arg0: i32) -> (i32, i32) {
    %c0_i32 = arith.constant 0 : i32
    %c0_i32_0 = arith.constant 0 : i32
    %c0_i32_1 = arith.constant 0 : i32
    return %c0_i32, %c0_i32_0 : i32, i32
  }
  func.func @transform_2(%arg0: i32) -> (i32, i32) {
    %c0_i32 = arith.constant 0 : i32
    %c0_i32_0 = arith.constant 0 : i32
    %c0_i32_1 = arith.constant 0 : i32
    return %c0_i32, %c0_i32_0 : i32, i32
  }
  func.func @transform_3(%arg0: i32) -> (i32, i32) {
    %c0_i32 = arith.constant 0 : i32
    %c0_i32_0 = arith.constant 0 : i32
    %c0_i32_1 = arith.constant 0 : i32
    return %c0_i32, %c0_i32_0 : i32, i32
  }
  func.func @transform_4(%arg0: i32) -> (i32, i32, i32) {
    %c0_i32 = arith.constant 0 : i32
    %c0_i32_0 = arith.constant 0 : i32
    %c0_i32_1 = arith.constant 0 : i32
    return %arg0, %c0_i32, %c0_i32_0 : i32, i32, i32
  }
}

</mosaic_0001>

<llo_original>
// kernel: tpu_custom_call.1
$region0: #{tpu_custom_call.1}
  #allocation0 [shape = 'u32[]', space=smem, size = 0x4, offset = 0x4, fixed_abs, tag = 'smem constant byte address 0x4 - core index']
  #allocation1 [shape = 'u32[144,128]{1,0:T(1,128)}', space=vmem, size = 0x12000, scoped, tag = 'internal scratch']
  #allocation2 [shape = 'bf16[1,10,10,8]{3,2,1,0:T(8,128)(2,1)}', space=vmem, size = 0xa000, scoped, tag = 'scratch operand']
  %s0 = inlined_call_operand.vmem [shape: f32[2,9,9,16], index: 0, kind: input, shape index: {}]
  %s1 = inlined_call_operand.vmem [shape: bf16[36,8], index: 1, kind: input, shape index: {}]
  %s2 = inlined_call_operand.vmem [shape: bf16[72,8], index: 2, kind: input, shape index: {}]
  %s3 = inlined_call_operand.vmem [shape: f32[4,8], index: 3, kind: input, shape index: {}]
  %s4 = inlined_call_operand.hbm [shape: f32[2,8,64], index: 4, kind: output, shape index: {}]
  %s5 = sld [smem:[#allocation0]]
  $region49: #{tpu_custom_call.1} parent=0
    _
  %s7 = ssub.s32 1, %s5
  %s8 = scalar_select 0, %s7, %s5
  $region1: #{tpu_custom_call.1} parent=0
    #allocation3 [shape = 'u8[8192]{0}', space=vmem, size = 0x2000, scoped, tag = 'output window, operand 0']
    #allocation4 [shape = 's32[2]{0}', space=sflag, size = 0x8, scoped, tag = 'scoped memory for tpu_custom_call.1']
    %9 = vsyncpa [#allocation4], 0
    %s10 = scalar_lea.sflag [#allocation4], 1
    %11 = vsyncpa %s10, 0
    loop: start=0, step=1, limit=4
    $region2: #{tpu_custom_call.1} parent=1 // loop_pre_header
      _
    $region3: #{tpu_custom_call.1} parent=1 // loop_header
      %s13 = sphi 0, %s17
      %p14 = scmp.ge.s32.totalorder %s13, 4
      %s23 = sphi 0, %s25
      %s26 = sphi 0, %s23
      %s27 = sphi 0, %s26
      %s43 = sphi 0, %s27
      %s47 = sphi 0, %s47
      %s49 = sphi 0, %s47
      %s50 = sphi 0, %s49
      %s64 = sphi 0, %s50
      %s68 = sphi 0, %s68
      %s70 = sphi 0, %s68
      %s71 = sphi 0, %s70
      %s85 = sphi 0, %s71
      %s89 = sphi 0, %s89
      %s91 = sphi 0, %s89
      %s92 = sphi 0, %s91
      %s106 = sphi 0, %s92
      %s112 = sphi 0, %s114
      %s115 = sphi 0, %s112
      %s116 = sphi 0, %s115
      %s132 = sphi 0, %s116
    $region4: #{tpu_custom_call.1} parent=1 // loop_header_branch
      %16 = sbr.rel (%p14) target = $region8
    $region5: #{tpu_custom_call.1} parent=1 // loop_body
      %s18 = ssub.s32 %s13, 1
      %s19 = ssub.s32 %s13, 2
      %s20 = sadd.s32 %s13, 1
      %s21 = ssub.s32 %s13, %s20
      %p22 = scmp.eq.s32.totalorder %s21, 0
      %s24 = sadd.s32 %s23, 1
      %s25 = scalar_select %p22, %s23, %s24
      %p28 = pneg %p22
      %p29 = scmp.eq.s32.totalorder %s13, 1
      %p30 = por %p28, %p29
      %p31 = scmp.ne.s32.totalorder %s23, %s26
      %p32 = scmp.eq.s32.totalorder %s13, 0
      %p33 = por %p31, %p32
      %p34 = scmp.ne.s32.totalorder %s23, %s26
      %p35 = scmp.eq.s32.totalorder %s18, 1
      %p36 = por %p34, %p35
      %p37 = scmp.ne.s32.totalorder %s26, %s27
      %p38 = scmp.eq.s32.totalorder %s18, 0
      %p39 = por %p37, %p38
      %p40 = scmp.ne.s32.totalorder %s26, %s27
      %p41 = scmp.eq.s32.totalorder %s19, 1
      %p42 = por %p40, %p41
      %p44 = scmp.ne.s32.totalorder %s27, %s43
      %p45 = scmp.eq.s32.totalorder %s19, 0
      %p46 = por %p44, %p45
      %s48 = sadd.s32 %s47, 1
      %p51 = scmp.eq.s32.totalorder %s13, 1
      %p52 = scmp.ne.s32.totalorder %s47, %s49
      %p53 = scmp.eq.s32.totalorder %s13, 0
      %p54 = por %p52, %p53
      %p55 = scmp.ne.s32.totalorder %s47, %s49
      %p56 = scmp.eq.s32.totalorder %s18, 1
      %p57 = por %p55, %p56
      %p58 = scmp.ne.s32.totalorder %s49, %s50
      %p59 = scmp.eq.s32.totalorder %s18, 0
      %p60 = por %p58, %p59
      %p61 = scmp.ne.s32.totalorder %s49, %s50
      %p62 = scmp.eq.s32.totalorder %s19, 1
      %p63 = por %p61, %p62
      %p65 = scmp.ne.s32.totalorder %s50, %s64
      %p66 = scmp.eq.s32.totalorder %s19, 0
      %p67 = por %p65, %p66
      %s69 = sadd.s32 %s68, 1
      %p72 = scmp.eq.s32.totalorder %s13, 1
      %p73 = scmp.ne.s32.totalorder %s68, %s70
      %p74 = scmp.eq.s32.totalorder %s13, 0
      %p75 = por %p73, %p74
      %p76 = scmp.ne.s32.totalorder %s68, %s70
      %p77 = scmp.eq.s32.totalorder %s18, 1
      %p78 = por %p76, %p77
      %p79 = scmp.ne.s32.totalorder %s70, %s71
      %p80 = scmp.eq.s32.totalorder %s18, 0
      %p81 = por %p79, %p80
      %p82 = scmp.ne.s32.totalorder %s70, %s71
      %p83 = scmp.eq.s32.totalorder %s19, 1
      %p84 = por %p82, %p83
      %p86 = scmp.ne.s32.totalorder %s71, %s85
      %p87 = scmp.eq.s32.totalorder %s19, 0
      %p88 = por %p86, %p87
      %s90 = sadd.s32 %s89, 1
      %p93 = scmp.eq.s32.totalorder %s13, 1
      %p94 = scmp.ne.s32.totalorder %s89, %s91
      %p95 = scmp.eq.s32.totalorder %s13, 0
      %p96 = por %p94, %p95
      %p97 = scmp.ne.s32.totalorder %s89, %s91
      %p98 = scmp.eq.s32.totalorder %s18, 1
      %p99 = por %p97, %p98
      %p100 = scmp.ne.s32.totalorder %s91, %s92
      %p101 = scmp.eq.s32.totalorder %s18, 0
      %p102 = por %p100, %p101
      %p103 = scmp.ne.s32.totalorder %s91, %s92
      %p104 = scmp.eq.s32.totalorder %s19, 1
      %p105 = por %p103, %p104
      %p107 = scmp.ne.s32.totalorder %s92, %s106
      %p108 = scmp.eq.s32.totalorder %s19, 0
      %p109 = por %p107, %p108
      %s110 = ssub.s32 %s13, %s20
      %p111 = scmp.eq.s32.totalorder %s110, 0
      %s113 = sadd.s32 %s112, 1
      %s114 = scalar_select %p111, %s112, %s113
      %p117 = pneg %p111
      %p118 = scmp.eq.s32.totalorder %s13, 1
      %p119 = por %p117, %p118
      %p120 = scmp.ne.s32.totalorder %s112, %s115
      %p121 = scmp.eq.s32.totalorder %s13, 0
      %p122 = por %p120, %p121
      %p123 = scmp.ne.s32.totalorder %s112, %s115
      %p124 = scmp.eq.s32.totalorder %s18, 1
      %p125 = por %p123, %p124
      %p126 = scmp.ne.s32.totalorder %s115, %s116
      %p127 = scmp.eq.s32.totalorder %s18, 0
      %p128 = por %p126, %p127
      %p129 = scmp.ne.s32.totalorder %s115, %s116
      %p130 = scmp.eq.s32.totalorder %s19, 1
      %p131 = por %p129, %p130
      %p133 = scmp.ne.s32.totalorder %s116, %s132
      %p134 = scmp.eq.s32.totalorder %s19, 0
      %p135 = por %p133, %p134
      %p136 = scmp.le.s32.totalorder 1, %s13
      %p137 = scmp.lt.s32.totalorder %s13, 3
      %p138 = pnand %p136, %p137
      %p139 = pneg %p138
      // Predicated region
      $region9: #{tpu_custom_call.1} parent=5 // pred_check
        _
      $region10: #{tpu_custom_call.1} parent=5 // pred_check_branch
        %141 = sbr.rel (%p138) target = $region12
      $region11: #{tpu_custom_call.1} parent=5 // pred_region
        %s142 = ssub.s32 %s13, 1
        // Predicated region
        $region13: #{tpu_custom_call.1} parent=11 // pred_check
          %p143 = pneg %p60
        $region14: #{tpu_custom_call.1} parent=11 // pred_check_branch
          %145 = sbr.rel (%p143) target = $region16
        $region15: #{tpu_custom_call.1} parent=11 // pred_region
          _
        $region16: #{tpu_custom_call.1} parent=11 // pred_fallthru
          _
        // Predicated region
        $region17: #{tpu_custom_call.1} parent=11 // pred_check
          %p146 = pneg %p81
        $region18: #{tpu_custom_call.1} parent=11 // pred_check_branch
          %148 = sbr.rel (%p146) target = $region20
        $region19: #{tpu_custom_call.1} parent=11 // pred_region
          _
        $region20: #{tpu_custom_call.1} parent=11 // pred_fallthru
          _
        // Predicated region
        $region21: #{tpu_custom_call.1} parent=11 // pred_check
          %p149 = pneg %p102
        $region22: #{tpu_custom_call.1} parent=11 // pred_check_branch
          %151 = sbr.rel (%p149) target = $region24
        $region23: #{tpu_custom_call.1} parent=11 // pred_region
          _
        $region24: #{tpu_custom_call.1} parent=11 // pred_fallthru
          _
      $region12: #{tpu_custom_call.1} parent=5 // pred_fallthru
        _
      %p152 = scmp.lt.s32.totalorder %s13, 2
      // Predicated region
      $region25: #{tpu_custom_call.1} parent=5 // pred_check
        %p153 = pneg %p152
      $region26: #{tpu_custom_call.1} parent=5 // pred_check_branch
        %155 = sbr.rel (%p153) target = $region28
      $region27: #{tpu_custom_call.1} parent=5 // pred_region
        // Predicated region
        $region29: #{tpu_custom_call.1} parent=27 // pred_check
          %p156 = pneg %p33
        $region30: #{tpu_custom_call.1} parent=27 // pred_check_branch
          %158 = sbr.rel (%p156) target = $region32
        $region31: #{tpu_custom_call.1} parent=27 // pred_region
          %p159 = scmp.lt.s32.totalorder %s13, 1
          %s160 = scalar_select %p159, %s13, 1
          %s161 = smul.addr %s160, 18
          %s162 = smul.addr %s161, 8
          %s163 = scalar_lea.vmem %s0, %s162
        $region32: #{tpu_custom_call.1} parent=27 // pred_fallthru
          _
      $region28: #{tpu_custom_call.1} parent=5 // pred_fallthru
        _
      %p164 = scmp.le.s32.totalorder 1, %s13
      %p165 = scmp.lt.s32.totalorder %s13, 3
      %p166 = pnand %p164, %p165
      %p167 = pneg %p166
      // Predicated region
      $region33: #{tpu_custom_call.1} parent=5 // pred_check
        _
      $region34: #{tpu_custom_call.1} parent=5 // pred_check_branch
        %169 = sbr.rel (%p166) target = $region36
      $region35: #{tpu_custom_call.1} parent=5 // pred_region
        %s170 = ssub.s32 %s13, 1
        %p171 = scmp.lt.s32.totalorder %s18, 1
        %s172 = scalar_select %p171, %s18, 1
        %s173 = smul.addr %s172, 18
        %s174 = smul.addr %s173, 8
        %s175 = scalar_lea.vmem %s0, %s174
        %p176 = pneg %p39
        %p177 = pneg %p36
        %p178 = pneg %p60
        %p179 = pneg %p57
        %p180 = pneg %p81
        %p181 = pneg %p78
        %p182 = pneg %p102
        %p183 = pneg %p99
        %p184 = pneg %p128
        %p185 = pneg %p125
        %s186 = sand.u32 %s115, 1
        %s187 = scalar_lea.sflag [#allocation4], %s186
        %s188 = sand.u32 %s115, 1
        %s189 = smul.addr %s188, 8
        %s190 = scalar_lea.vmem [#allocation3], %s189
        %p191 = scmp.lt.s32.totalorder %s18, 1
        %s192 = scalar_select %p191, %s18, 1
        %s193 = smul.addr %s192, 18
        %s194 = smul.addr %s193, 8
        %s195 = scalar_lea.vmem %s0, %s194
        %v197 = vld [vmem:[%s3] sm:$0x1]
        %v198 = vld [vmem:[%s3 + $0x1] sm:$0x1]
        %v199 = vld [vmem:[%s3 + $0x2] sm:$0x1]
        %v200 = vld [vmem:[%s3 + $0x3] sm:$0x1]
        %v201 = vld [vmem:[%s195] sm:$0xff]
        %v202 = vld [vmem:[%s195 + $0x10] sm:$0xff]
        %v203 = vld [vmem:[%s195 + $0x20] sm:$0xff]
        %v204 = vld [vmem:[%s195 + $0x30] sm:$0xff]
        %v205 = vld [vmem:[%s195 + $0x40] sm:$0xff]
        %v206 = vld [vmem:[%s195 + $0x50] sm:$0xff]
        %v207 = vld [vmem:[%s195 + $0x60] sm:$0xff]
        %v208 = vld [vmem:[%s195 + $0x70] sm:$0xff]
        %v209 = vpack.c.bf16 %v202, %v201
        %v210 = vpack.c.bf16 %v204, %v203
        %v211 = vpack.c.bf16 %v206, %v205
        %v212 = vpack.c.bf16 %v208, %v207
        %v213 = vld [vmem:[%s195 + $0x1] sm:$0xff]
        %v214 = vld [vmem:[%s195 + $0x11] sm:$0xff]
        %v215 = vld [vmem:[%s195 + $0x21] sm:$0xff]
        %v216 = vld [vmem:[%s195 + $0x31] sm:$0xff]
        %v217 = vld [vmem:[%s195 + $0x41] sm:$0xff]
        %v218 = vld [vmem:[%s195 + $0x51] sm:$0xff]
        %v219 = vld [vmem:[%s195 + $0x61] sm:$0xff]
        %v220 = vld [vmem:[%s195 + $0x71] sm:$0xff]
        %v221 = vpack.c.bf16 %v214, %v213
        %v222 = vpack.c.bf16 %v216, %v215
        %v223 = vpack.c.bf16 %v218, %v217
        %v224 = vpack.c.bf16 %v220, %v219
        %s225 = scalar_lea.vmem %s195, 16
        %v226 = vld [vmem:[%s225] sm:$0xff]
        %v227 = vld [vmem:[%s225 + $0x10] sm:$0xff]
        %v228 = vld [vmem:[%s225 + $0x20] sm:$0xff]
        %v229 = vld [vmem:[%s225 + $0x30] sm:$0xff]
        %v230 = vld [vmem:[%s225 + $0x40] sm:$0xff]
        %v231 = vld [vmem:[%s225 + $0x50] sm:$0xff]
        %v232 = vld [vmem:[%s225 + $0x60] sm:$0xff]
        %v233 = vld [vmem:[%s225 + $0x70] sm:$0xff]
        %v234 = vpack.c.bf16 %v227, %v226
        %v235 = vpack.c.bf16 %v229, %v228
        %v236 = vpack.c.bf16 %v231, %v230
        %v237 = vpack.c.bf16 %v233, %v232
        %v238 = vld [vmem:[%s225 + $0x1] sm:$0xff]
        %v239 = vld [vmem:[%s225 + $0x11] sm:$0xff]
        %v240 = vld [vmem:[%s225 + $0x21] sm:$0xff]
        %v241 = vld [vmem:[%s225 + $0x31] sm:$0xff]
        %v242 = vld [vmem:[%s225 + $0x41] sm:$0xff]
        %v243 = vld [vmem:[%s225 + $0x51] sm:$0xff]
        %v244 = vld [vmem:[%s225 + $0x61] sm:$0xff]
        %v245 = vld [vmem:[%s225 + $0x71] sm:$0xff]
        %v246 = vpack.c.bf16 %v239, %v238
        %v247 = vpack.c.bf16 %v241, %v240
        %v248 = vpack.c.bf16 %v243, %v242
        %v249 = vpack.c.bf16 %v245, %v244
        %254 = vrot.lane.b32.xlu0 %v221, 8
        %v255 = vpop.permute.xlu0 %254
        %256 = vrot.lane.b32.xlu0 %v222, 8
        %v257 = vpop.permute.xlu0 %256
        %258 = vrot.lane.b32.xlu0 %v223, 8
        %v259 = vpop.permute.xlu0 %258
        %260 = vrot.lane.b32.xlu0 %v224, 8
        %v261 = vpop.permute.xlu0 %260
        %266 = vrot.lane.b32.xlu0 %v209, 4
        %v267 = vpop.permute.xlu0 %266
        %268 = vrot.lane.b32.xlu0 %v210, 4
        %v269 = vpop.permute.xlu0 %268
        %270 = vrot.lane.b32.xlu0 %v211, 4
        %v271 = vpop.permute.xlu0 %270
        %272 = vrot.lane.b32.xlu0 %v212, 4
        %v273 = vpop.permute.xlu0 %272
        %274 = vrot.lane.b32.xlu0 %v221, 12
        %v275 = vpop.permute.xlu0 %274
        %276 = vrot.lane.b32.xlu0 %v222, 12
        %v277 = vpop.permute.xlu0 %276
        %278 = vrot.lane.b32.xlu0 %v223, 12
        %v279 = vpop.permute.xlu0 %278
        %280 = vrot.lane.b32.xlu0 %v224, 12
        %v281 = vpop.permute.xlu0 %280
        %286 = vrot.lane.b32.xlu0 %v234, 24
        %v287 = vpop.permute.xlu0 %286
        %288 = vrot.lane.b32.xlu0 %v235, 24
        %v289 = vpop.permute.xlu0 %288
        %290 = vrot.lane.b32.xlu0 %v236, 24
        %v291 = vpop.permute.xlu0 %290
        %292 = vrot.lane.b32.xlu0 %v237, 24
        %v293 = vpop.permute.xlu0 %292
        %298 = vrot.lane.b32.xlu0 %v246, 32
        %v299 = vpop.permute.xlu0 %298
        %300 = vrot.lane.b32.xlu0 %v247, 32
        %v301 = vpop.permute.xlu0 %300
        %302 = vrot.lane.b32.xlu0 %v248, 32
        %v303 = vpop.permute.xlu0 %302
        %304 = vrot.lane.b32.xlu0 %v249, 32
        %v305 = vpop.permute.xlu0 %304
        %vm306 = vcmask 31744
        %vm311 = vcmask 64512
        %v313 = vsel %vm311, %v209, %v255
        %v315 = vsel %vm311, %v210, %v257
        %v317 = vsel %vm311, %v211, %v259
        %v319 = vsel %vm311, %v212, %v261
        %vm320 = vcmask 97280
        %v322 = vsel %vm320, %v313, %v267
        %v324 = vsel %vm320, %v315, %v269
        %v326 = vsel %vm320, %v317, %v271
        %v328 = vsel %vm320, %v319, %v273
        %vm329 = vcmask 130048
        %v330 = vsel %vm329, %v322, %v267
        %v331 = vsel %vm329, %v324, %v269
        %v332 = vsel %vm329, %v326, %v271
        %v333 = vsel %vm329, %v328, %v273
        %vm334 = vcmask 162816
        %v336 = vsel %vm334, %v330, %v275
        %v338 = vsel %vm334, %v331, %v277
        %v340 = vsel %vm334, %v332, %v279
        %v342 = vsel %vm334, %v333, %v281
        %vm343 = vcmask 195584
        %v345 = vsel %vm343, %v336, %v287
        %v347 = vsel %vm343, %v338, %v289
        %v349 = vsel %vm343, %v340, %v291
        %v351 = vsel %vm343, %v342, %v293
        %vm352 = vcmask 228352
        %v353 = vsel %vm352, %v345, %v287
        %v354 = vsel %vm352, %v347, %v289
        %v355 = vsel %vm352, %v349, %v291
        %v356 = vsel %vm352, %v351, %v293
        %vm357 = vcmask 261120
        %v359 = vsel %vm357, %v353, %v299
        %v361 = vsel %vm357, %v354, %v301
        %v363 = vsel %vm357, %v355, %v303
        %v365 = vsel %vm357, %v356, %v305
        %v366 = vld [vmem:[%s1] sm:$0xf]
        %v367 = vld [vmem:[%s1 + $0x4] sm:$0xf]
        %v368 = vld [vmem:[%s1 + $0x8] sm:$0xf]
        %v369 = vld [vmem:[%s1 + $0xc] sm:$0xf]
        %v370 = vld [vmem:[%s1 + $0x10] sm:$0x3]
        %v376 = vunpack.c.l.b16 %v366
        %v377 = vunpack.c.l.b16 %v367
        %v378 = vunpack.c.l.b16 %v368
        %v379 = vunpack.c.l.b16 %v369
        %v380 = vunpack.c.l.b16 %v370
        %v381 = vpack.c.b16 %v377, %v376
        %v382 = vpack.c.b16 %v379, %v378
        %v383 = vpack.c.b16 %v380, %v380
        %vm386 = vcmask 293888
        %v387 = vsel %vm386, %v359, 0
        %v389 = vsel %vm386, %v361, 0
        %v391 = vsel %vm386, %v363, 0
        %v393 = vsel %vm386, %v365, 0
        %vm395 = vcmask 1041408
        %v397 = vsel %vm395, %v383, 0
        %399 = vmatprep.subr.bf16.mxu0 0
        %400 = vmatpush1.bf16.msra.mxu0 0
        %401 = vmatprep.subr.bf16.mxu0 0
        %402 = vmatpush1.bf16.msra.mxu0 0
        %403 = vmatprep.subr.bf16.mxu0 0
        %404 = vmatpush1.bf16.msra.mxu0 0
        %405 = vmatprep.subr.bf16.mxu0 0
        %406 = vmatpush1.bf16.msra.mxu0 0
        %407 = vmatprep.subr.bf16.mxu0 0
        %408 = vmatpush1.bf16.msra.mxu0 0
        %409 = vmatprep.subr.bf16.mxu0 0
        %410 = vmatpush1.bf16.msra.mxu0 %v397
        %411 = vmatprep.subr.bf16.mxu0 0
        %412 = vmatpush1.bf16.msra.mxu0 %v382
        %413 = vmatprep.subr.bf16.mxu0 0
        %414 = vmatpush1.bf16.msra.mxu0 %v381
        %415 = vmatprep.subr.bf16.mxu0 0
        %416 = vmatpush2.bf16.msra.mxu0 0
        %417 = vmatprep.subr.bf16.mxu0 0
        %418 = vmatpush2.bf16.msra.mxu0 0
        %419 = vmatprep.subr.bf16.mxu0 0
        %420 = vmatpush2.bf16.msra.mxu0 0
        %421 = vmatprep.subr.bf16.mxu0 0
        %422 = vmatpush2.bf16.msra.mxu0 0
        %423 = vmatprep.subr.bf16.mxu0 0
        %424 = vmatpush2.bf16.msra.mxu0 0
        %425 = vmatprep.subr.bf16.mxu0 0
        %426 = vmatpush2.bf16.msra.mxu0 0
        %427 = vmatprep.subr.bf16.mxu0 0
        %428 = vmatpush2.bf16.msra.mxu0 0
        %429 = vmatprep.subr.bf16.mxu0 0
        %430 = vmatpush2.bf16.msra.mxu0 0
        %431 = vmatprep.mubr.bf16.mxu0 0
        %432 = vmatmul.mubr.bf16.gmra.mxu0 %v387
        %v433 = vpop.f32.mrf.mxu0
        %v434 = vadd.f32 0.0, %v433
        %v435 = vpop.f32.mrf.mxu0
        %v436 = vpop.f32.mrf.mxu0
        %v437 = vadd.f32 0.0, %v436
        %v438 = vpop.f32.mrf.mxu0
        %439 = vmatprep.mubr.bf16.mxu0 0
        %440 = vmatmul.mubr.bf16.gmra.mxu0 %v389
        %v441 = vpop.f32.mrf.mxu0
        %v442 = vadd.f32 0.0, %v441
        %v443 = vpop.f32.mrf.mxu0
        %v444 = vpop.f32.mrf.mxu0
        %v445 = vadd.f32 0.0, %v444
        %v446 = vpop.f32.mrf.mxu0
        %447 = vmatprep.mubr.bf16.mxu0 0
        %448 = vmatmul.mubr.bf16.gmra.mxu0 %v391
        %v449 = vpop.f32.mrf.mxu0
        %v450 = vadd.f32 0.0, %v449
        %v451 = vpop.f32.mrf.mxu0
        %v452 = vpop.f32.mrf.mxu0
        %v453 = vadd.f32 0.0, %v452
        %v454 = vpop.f32.mrf.mxu0
        %455 = vmatprep.mubr.bf16.mxu0 0
        %456 = vmatmul.mubr.bf16.gmra.mxu0 %v393
        %v457 = vpop.f32.mrf.mxu0
        %v458 = vadd.f32 0.0, %v457
        %v459 = vpop.f32.mrf.mxu0
        %v460 = vpop.f32.mrf.mxu0
        %v461 = vadd.f32 0.0, %v460
        %v462 = vpop.f32.mrf.mxu0
        %463 = vdwg.mxu0
        %v464 = vsel %vm306, %v434, 0.0
        %v465 = vsel %vm306, %v437, 0.0
        %v466 = vadd.f32 %v464, %v465
        %v467 = vsel %vm306, %v442, 0.0
        %v468 = vadd.f32 %v466, %v467
        %v469 = vsel %vm306, %v445, 0.0
        %v470 = vadd.f32 %v468, %v469
        %v471 = vsel %vm306, %v450, 0.0
        %v472 = vadd.f32 %v470, %v471
        %v473 = vsel %vm306, %v453, 0.0
        %v474 = vadd.f32 %v472, %v473
        %v475 = vsel %vm306, %v458, 0.0
        %v476 = vadd.f32 %v474, %v475
        %v477 = vsel %vm306, %v461, 0.0
        %v478 = vadd.f32 %v476, %v477
        %479 = vadd.xlane.f32.xlu0 %v478
        %v480 = vpop.xlane.xlu0 %479
        %v481 = vrot.slane %v480, 4
        %v482 = vadd.f32 %v480, %v481
        %v483 = vrot.slane %v482, 2
        %v484 = vadd.f32 %v482, %v483
        %v485 = vrot.slane %v484, 1
        %v486 = vadd.f32 %v484, %v485
        %v487 = vrcp.pop 256.0
        %v488 = vmul.f32 %v486, %v487
        %v489 = vsub.f32 %v434, %v488
        %v490 = vsub.f32 %v437, %v488
        %v491 = vsub.f32 %v442, %v488
        %v492 = vsub.f32 %v445, %v488
        %v493 = vsub.f32 %v450, %v488
        %v494 = vsub.f32 %v453, %v488
        %v495 = vsub.f32 %v458, %v488
        %v496 = vsub.f32 %v461, %v488
        %v497 = vmul.f32 %v489, %v489
        %v498 = vmul.f32 %v490, %v490
        %v499 = vmul.f32 %v491, %v491
        %v500 = vmul.f32 %v492, %v492
        %v501 = vmul.f32 %v493, %v493
        %v502 = vmul.f32 %v494, %v494
        %v503 = vmul.f32 %v495, %v495
        %v504 = vmul.f32 %v496, %v496
        %v505 = vsel %vm306, %v497, 0.0
        %v506 = vsel %vm306, %v498, 0.0
        %v507 = vadd.f32 %v505, %v506
        %v508 = vsel %vm306, %v499, 0.0
        %v509 = vadd.f32 %v507, %v508
        %v510 = vsel %vm306, %v500, 0.0
        %v511 = vadd.f32 %v509, %v510
        %v512 = vsel %vm306, %v501, 0.0
        %v513 = vadd.f32 %v511, %v512
        %v514 = vsel %vm306, %v502, 0.0
        %v515 = vadd.f32 %v513, %v514
        %v516 = vsel %vm306, %v503, 0.0
        %v517 = vadd.f32 %v515, %v516
        %v518 = vsel %vm306, %v504, 0.0
        %v519 = vadd.f32 %v517, %v518
        %520 = vadd.xlane.f32.xlu0 %v519
        %v521 = vpop.xlane.xlu0 %520
        %v522 = vrot.slane %v521, 4
        %v523 = vadd.f32 %v521, %v522
        %v524 = vrot.slane %v523, 2
        %v525 = vadd.f32 %v523, %v524
        %v526 = vrot.slane %v525, 1
        %v527 = vadd.f32 %v525, %v526
        %v528 = vmul.f32 %v527, %v487
        %v529 = vadd.f32 %v528, 1e-05
        %v530 = vrsqrt.pop %v529
        %v531 = vmul.f32 %v489, %v530
        %v532 = vmul.f32 %v490, %v530
        %v533 = vmul.f32 %v491, %v530
        %v534 = vmul.f32 %v492, %v530
        %v535 = vmul.f32 %v493, %v530
        %v536 = vmul.f32 %v494, %v530
        %v537 = vmul.f32 %v495, %v530
        %v538 = vmul.f32 %v496, %v530
        %547 = vrot.lane.b32.xlu0 %v434, 124
        %v548 = vpop.permute.xlu0 %547
        %549 = vrot.lane.b32.xlu0 %v437, 124
        %v550 = vpop.permute.xlu0 %549
        %551 = vrot.lane.b32.xlu0 %v442, 124
        %v552 = vpop.permute.xlu0 %551
        %553 = vrot.lane.b32.xlu0 %v445, 124
        %v554 = vpop.permute.xlu0 %553
        %555 = vrot.lane.b32.xlu0 %v450, 124
        %v556 = vpop.permute.xlu0 %555
        %557 = vrot.lane.b32.xlu0 %v453, 124
        %v558 = vpop.permute.xlu0 %557
        %559 = vrot.lane.b32.xlu0 %v458, 124
        %v560 = vpop.permute.xlu0 %559
        %561 = vrot.lane.b32.xlu0 %v461, 124
        %v562 = vpop.permute.xlu0 %561
        %v571 = vsel %vm306, %v548, 0.0
        %v572 = vsel %vm306, %v550, 0.0
        %v573 = vadd.f32 %v571, %v572
        %v574 = vsel %vm306, %v552, 0.0
        %v575 = vadd.f32 %v573, %v574
        %v576 = vsel %vm306, %v554, 0.0
        %v577 = vadd.f32 %v575, %v576
        %v578 = vsel %vm306, %v556, 0.0
        %v579 = vadd.f32 %v577, %v578
        %v580 = vsel %vm306, %v558, 0.0
        %v581 = vadd.f32 %v579, %v580
        %v582 = vsel %vm306, %v560, 0.0
        %v583 = vadd.f32 %v581, %v582
        %v584 = vsel %vm306, %v562, 0.0
        %v585 = vadd.f32 %v583, %v584
        %586 = vadd.xlane.f32.xlu0 %v585
        %v587 = vpop.xlane.xlu0 %586
        %v588 = vrot.slane %v587, 4
        %v589 = vadd.f32 %v587, %v588
        %v590 = vrot.slane %v589, 2
        %v591 = vadd.f32 %v589, %v590
        %v592 = vrot.slane %v591, 1
        %v593 = vadd.f32 %v591, %v592
        %v594 = vmul.f32 %v593, %v487
        %v595 = vsub.f32 %v434, %v594
        %v596 = vsub.f32 %v437, %v594
        %v597 = vsub.f32 %v442, %v594
        %v598 = vsub.f32 %v445, %v594
        %v599 = vsub.f32 %v450, %v594
        %v600 = vsub.f32 %v453, %v594
        %v601 = vsub.f32 %v458, %v594
        %v602 = vsub.f32 %v461, %v594
        %v603 = vmul.f32 %v595, %v595
        %v604 = vmul.f32 %v596, %v596
        %v605 = vmul.f32 %v597, %v597
        %v606 = vmul.f32 %v598, %v598
        %v607 = vmul.f32 %v599, %v599
        %v608 = vmul.f32 %v600, %v600
        %v609 = vmul.f32 %v601, %v601
        %v610 = vmul.f32 %v602, %v602
        %619 = vrot.lane.b32.xlu0 %v603, 124
        %v620 = vpop.permute.xlu0 %619
        %621 = vrot.lane.b32.xlu0 %v604, 124
        %v622 = vpop.permute.xlu0 %621
        %623 = vrot.lane.b32.xlu0 %v605, 124
        %v624 = vpop.permute.xlu0 %623
        %625 = vrot.lane.b32.xlu0 %v606, 124
        %v626 = vpop.permute.xlu0 %625
        %627 = vrot.lane.b32.xlu0 %v607, 124
        %v628 = vpop.permute.xlu0 %627
        %629 = vrot.lane.b32.xlu0 %v608, 124
        %v630 = vpop.permute.xlu0 %629
        %631 = vrot.lane.b32.xlu0 %v609, 124
        %v632 = vpop.permute.xlu0 %631
        %633 = vrot.lane.b32.xlu0 %v610, 124
        %v634 = vpop.permute.xlu0 %633
        %v643 = vsel %vm306, %v620, 0.0
        %v644 = vsel %vm306, %v622, 0.0
        %v645 = vadd.f32 %v643, %v644
        %v646 = vsel %vm306, %v624, 0.0
        %v647 = vadd.f32 %v645, %v646
        %v648 = vsel %vm306, %v626, 0.0
        %v649 = vadd.f32 %v647, %v648
        %v650 = vsel %vm306, %v628, 0.0
        %v651 = vadd.f32 %v649, %v650
        %v652 = vsel %vm306, %v630, 0.0
        %v653 = vadd.f32 %v651, %v652
        %v654 = vsel %vm306, %v632, 0.0
        %v655 = vadd.f32 %v653, %v654
        %v656 = vsel %vm306, %v634, 0.0
        %v657 = vadd.f32 %v655, %v656
        %658 = vadd.xlane.f32.xlu0 %v657
        %v659 = vpop.xlane.xlu0 %658
        %v660 = vrot.slane %v659, 4
        %v661 = vadd.f32 %v659, %v660
        %v662 = vrot.slane %v661, 2
        %v663 = vadd.f32 %v661, %v662
        %v664 = vrot.slane %v663, 1
        %v665 = vadd.f32 %v663, %v664
        %v666 = vmul.f32 %v665, %v487
        %v667 = vadd.f32 %v666, 1e-05
        %v668 = vrsqrt.pop %v667
        %v669 = vmul.f32 %v595, %v668
        %v670 = vmul.f32 %v596, %v668
        %v671 = vmul.f32 %v597, %v668
        %v672 = vmul.f32 %v598, %v668
        %v673 = vmul.f32 %v599, %v668
        %v674 = vmul.f32 %v600, %v668
        %v675 = vmul.f32 %v601, %v668
        %v676 = vmul.f32 %v602, %v668
        %v677 = vsel %vm306, %v531, %v669
        %v678 = vsel %vm306, %v532, %v670
        %v679 = vsel %vm306, %v533, %v671
        %v680 = vsel %vm306, %v534, %v672
        %v681 = vsel %vm306, %v535, %v673
        %v682 = vsel %vm306, %v536, %v674
        %v683 = vsel %vm306, %v537, %v675
        %v684 = vsel %vm306, %v538, %v676
        %v685 = vlaneseq
        %v686 = vshrl.u32 %v685, 7
        %v687 = vsub.s32 0, %v686
        %v688 = vrot.slane %v197, %v687
        %v689 = vmul.f32 %v677, %v688
        %v690 = vmul.f32 %v678, %v688
        %v691 = vmul.f32 %v679, %v688
        %v692 = vmul.f32 %v680, %v688
        %v693 = vmul.f32 %v681, %v688
        %v694 = vmul.f32 %v682, %v688
        %v695 = vmul.f32 %v683, %v688
        %v696 = vmul.f32 %v684, %v688
        %v697 = vlaneseq
        %v698 = vshrl.u32 %v697, 7
        %v699 = vsub.s32 0, %v698
        %v700 = vrot.slane %v198, %v699
        %v701 = vadd.f32 %v689, %v700
        %v702 = vadd.f32 %v690, %v700
        %v703 = vadd.f32 %v691, %v700
        %v704 = vadd.f32 %v692, %v700
        %v705 = vadd.f32 %v693, %v700
        %v706 = vadd.f32 %v694, %v700
        %v707 = vadd.f32 %v695, %v700
        %v708 = vadd.f32 %v696, %v700
        %v709 = vmax.f32 %v701, 0.0
        %v710 = vmax.f32 %v702, 0.0
        %v711 = vmax.f32 %v703, 0.0
        %v712 = vmax.f32 %v704, 0.0
        %v713 = vmax.f32 %v705, 0.0
        %v714 = vmax.f32 %v706, 0.0
        %v715 = vmax.f32 %v707, 0.0
        %v716 = vmax.f32 %v708, 0.0
        %vm717 = vcmask 60416
        %718 = vst.msk [vmem:[#allocation2] sm:$0xf] %vm717, 0
        %vm719 = vcmask 57344
        %720 = vst.msk [vmem:[#allocation2 + $0x4] sm:$0x1] %vm719, 0
        %s721 = scalar_lea.vmem [#allocation2], 72
        %722 = vst.msk [vmem:[%s721] sm:$0xf] %vm717, 0
        %723 = vst.msk [vmem:[%s721 + $0x4] sm:$0x1] %vm719, 0
        %s724 = scalar_lea.vmem [#allocation2], 8
        %vm725 = vcmask 57344
        %vm726 = vsmask.f32 256
        %vm727 = vmand %vm725, %vm726
        %v728 = vld [vmem:[%s724] sm:$0x1]
        %v729 = vsel %vm727, 0, %v728
        %730 = vst [vmem:[%s724] sm:$0x1] %v729
        %v731 = vld [vmem:[%s724 + $0x8] sm:$0x1]
        %v732 = vsel %vm727, 0, %v731
        %733 = vst [vmem:[%s724 + $0x8] sm:$0x1] %v732
        %v734 = vld [vmem:[%s724 + $0x10] sm:$0x1]
        %v735 = vsel %vm727, 0, %v734
        %736 = vst [vmem:[%s724 + $0x10] sm:$0x1] %v735
        %v737 = vld [vmem:[%s724 + $0x18] sm:$0x1]
        %v738 = vsel %vm727, 0, %v737
        %739 = vst [vmem:[%s724 + $0x18] sm:$0x1] %v738
        %v740 = vld [vmem:[%s724 + $0x20] sm:$0x1]
        %v741 = vsel %vm727, 0, %v740
        %742 = vst [vmem:[%s724 + $0x20] sm:$0x1] %v741
        %v743 = vld [vmem:[%s724 + $0x28] sm:$0x1]
        %v744 = vsel %vm727, 0, %v743
        %745 = vst [vmem:[%s724 + $0x28] sm:$0x1] %v744
        %v746 = vld [vmem:[%s724 + $0x30] sm:$0x1]
        %v747 = vsel %vm727, 0, %v746
        %748 = vst [vmem:[%s724 + $0x30] sm:$0x1] %v747
        %v749 = vld [vmem:[%s724 + $0x38] sm:$0x1]
        %v750 = vsel %vm727, 0, %v749
        %751 = vst [vmem:[%s724 + $0x38] sm:$0x1] %v750
        %vm752 = vsmask.f32 7938
        %vm753 = vmand %vm725, %vm752
        %v754 = vld [vmem:[%s724 + $0x4] sm:$0x1]
        %v755 = vsel %vm753, 0, %v754
        %756 = vst [vmem:[%s724 + $0x4] sm:$0x1] %v755
        %v757 = vld [vmem:[%s724 + $0xc] sm:$0x1]
        %v758 = vsel %vm753, 0, %v757
        %759 = vst [vmem:[%s724 + $0xc] sm:$0x1] %v758
        %v760 = vld [vmem:[%s724 + $0x14] sm:$0x1]
        %v761 = vsel %vm753, 0, %v760
        %762 = vst [vmem:[%s724 + $0x14] sm:$0x1] %v761
        %v763 = vld [vmem:[%s724 + $0x1c] sm:$0x1]
        %v764 = vsel %vm753, 0, %v763
        %765 = vst [vmem:[%s724 + $0x1c] sm:$0x1] %v764
        %v766 = vld [vmem:[%s724 + $0x24] sm:$0x1]
        %v767 = vsel %vm753, 0, %v766
        %768 = vst [vmem:[%s724 + $0x24] sm:$0x1] %v767
        %v769 = vld [vmem:[%s724 + $0x2c] sm:$0x1]
        %v770 = vsel %vm753, 0, %v769
        %771 = vst [vmem:[%s724 + $0x2c] sm:$0x1] %v770
        %v772 = vld [vmem:[%s724 + $0x34] sm:$0x1]
        %v773 = vsel %vm753, 0, %v772
        %774 = vst [vmem:[%s724 + $0x34] sm:$0x1] %v773
        %v775 = vld [vmem:[%s724 + $0x3c] sm:$0x1]
        %v776 = vsel %vm753, 0, %v775
        %777 = vst [vmem:[%s724 + $0x3c] sm:$0x1] %v776
        %v778 = vpack.c.bf16 %v709, %v709
        %v779 = vpack.c.bf16 %v710, %v710
        %v780 = vpack.c.bf16 %v711, %v711
        %v781 = vpack.c.bf16 %v712, %v712
        %v782 = vpack.c.bf16 %v713, %v713
        %v783 = vpack.c.bf16 %v714, %v714
        %v784 = vpack.c.bf16 %v715, %v715
        %v785 = vpack.c.bf16 %v716, %v716
        %v794 = vunpack.c.l.b16 %v778
        %v795 = vunpack.c.l.b16 %v779
        %v796 = vunpack.c.l.b16 %v780
        %v797 = vunpack.c.l.b16 %v781
        %v798 = vunpack.c.l.b16 %v782
        %v799 = vunpack.c.l.b16 %v783
        %v800 = vunpack.c.l.b16 %v784
        %v801 = vunpack.c.l.b16 %v785
        %v802 = vpack.c.b16 %v794, %v794
        %v803 = vpack.c.b16 %v795, %v795
        %v804 = vpack.c.b16 %v796, %v796
        %v805 = vpack.c.b16 %v797, %v797
        %v806 = vpack.c.b16 %v798, %v798
        %v807 = vpack.c.b16 %v799, %v799
        %v808 = vpack.c.b16 %v800, %v800
        %v809 = vpack.c.b16 %v801, %v801
        %v811 = vshrl.u32 %v802, 16
        %v813 = vrot.slane %v811, 7
        %v814 = vshll.u32 %v802, 16
        %v816 = vor.u32 %v813, %v814
        %v817 = vrot.slane %v813, 4
        %v819 = vshrl.u32 %v803, 16
        %v821 = vrot.slane %v819, 7
        %v822 = vshll.u32 %v803, 16
        %v824 = vor.u32 %v821, %v822
        %v825 = vrot.slane %v821, 4
        %v827 = vshrl.u32 %v804, 16
        %v829 = vrot.slane %v827, 7
        %v830 = vshll.u32 %v804, 16
        %v832 = vor.u32 %v829, %v830
        %v833 = vrot.slane %v829, 4
        %v835 = vshrl.u32 %v805, 16
        %v837 = vrot.slane %v835, 7
        %v838 = vshll.u32 %v805, 16
        %v840 = vor.u32 %v837, %v838
        %v841 = vrot.slane %v837, 4
        %v843 = vshrl.u32 %v806, 16
        %v845 = vrot.slane %v843, 7
        %v846 = vshll.u32 %v806, 16
        %v848 = vor.u32 %v845, %v846
        %v849 = vrot.slane %v845, 4
        %v851 = vshrl.u32 %v807, 16
        %v853 = vrot.slane %v851, 7
        %v854 = vshll.u32 %v807, 16
        %v856 = vor.u32 %v853, %v854
        %v857 = vrot.slane %v853, 4
        %v859 = vshrl.u32 %v808, 16
        %v861 = vrot.slane %v859, 7
        %v862 = vshll.u32 %v808, 16
        %v864 = vor.u32 %v861, %v862
        %v865 = vrot.slane %v861, 4
        %v867 = vshrl.u32 %v809, 16
        %v869 = vrot.slane %v867, 7
        %v870 = vshll.u32 %v809, 16
        %v872 = vor.u32 %v869, %v870
        %v873 = vrot.slane %v869, 4
        %vm890 = vcmask 60416
        %vm891 = vmand %vm890, %vm752
        %v892 = vld [vmem:[%s724] sm:$0xf]
        %v893 = vsel %vm891, %v816, %v892
        %894 = vst [vmem:[%s724] sm:$0xf] %v893
        %v895 = vld [vmem:[%s724 + $0x4] sm:$0x1]
        %v896 = vsel %vm727, %v817, %v895
        %897 = vst [vmem:[%s724 + $0x4] sm:$0x1] %v896
        %v898 = vld [vmem:[%s724 + $0x8] sm:$0xf]
        %v899 = vsel %vm891, %v824, %v898
        %900 = vst [vmem:[%s724 + $0x8] sm:$0xf] %v899
        %v901 = vld [vmem:[%s724 + $0xc] sm:$0x1]
        %v902 = vsel %vm727, %v825, %v901
        %903 = vst [vmem:[%s724 + $0xc] sm:$0x1] %v902
        %v904 = vld [vmem:[%s724 + $0x10] sm:$0xf]
        %v905 = vsel %vm891, %v832, %v904
        %906 = vst [vmem:[%s724 + $0x10] sm:$0xf] %v905
        %v907 = vld [vmem:[%s724 + $0x14] sm:$0x1]
        %v908 = vsel %vm727, %v833, %v907
        %909 = vst [vmem:[%s724 + $0x14] sm:$0x1] %v908
        %v910 = vld [vmem:[%s724 + $0x18] sm:$0xf]
        %v911 = vsel %vm891, %v840, %v910
        %912 = vst [vmem:[%s724 + $0x18] sm:$0xf] %v911
        %v913 = vld [vmem:[%s724 + $0x1c] sm:$0x1]
        %v914 = vsel %vm727, %v841, %v913
        %915 = vst [vmem:[%s724 + $0x1c] sm:$0x1] %v914
        %v916 = vld [vmem:[%s724 + $0x20] sm:$0xf]
        %v917 = vsel %vm891, %v848, %v916
        %918 = vst [vmem:[%s724 + $0x20] sm:$0xf] %v917
        %v919 = vld [vmem:[%s724 + $0x24] sm:$0x1]
        %v920 = vsel %vm727, %v849, %v919
        %921 = vst [vmem:[%s724 + $0x24] sm:$0x1] %v920
        %v922 = vld [vmem:[%s724 + $0x28] sm:$0xf]
        %v923 = vsel %vm891, %v856, %v922
        %924 = vst [vmem:[%s724 + $0x28] sm:$0xf] %v923
        %v925 = vld [vmem:[%s724 + $0x2c] sm:$0x1]
        %v926 = vsel %vm727, %v857, %v925
        %927 = vst [vmem:[%s724 + $0x2c] sm:$0x1] %v926
        %v928 = vld [vmem:[%s724 + $0x30] sm:$0xf]
        %v929 = vsel %vm891, %v864, %v928
        %930 = vst [vmem:[%s724 + $0x30] sm:$0xf] %v929
        %v931 = vld [vmem:[%s724 + $0x34] sm:$0x1]
        %v932 = vsel %vm727, %v865, %v931
        %933 = vst [vmem:[%s724 + $0x34] sm:$0x1] %v932
        %v934 = vld [vmem:[%s724 + $0x38] sm:$0xf]
        %v935 = vsel %vm891, %v872, %v934
        %936 = vst [vmem:[%s724 + $0x38] sm:$0xf] %v935
        %v937 = vld [vmem:[%s724 + $0x3c] sm:$0x1]
        %v938 = vsel %vm727, %v873, %v937
        %939 = vst [vmem:[%s724 + $0x3c] sm:$0x1] %v938
        %v940 = vld [vmem:[#allocation2] sm:$0xf]
        %v941 = vld [vmem:[#allocation2 + $0x8] sm:$0xf]
        %v942 = vld [vmem:[#allocation2 + $0x10] sm:$0xf]
        %v943 = vld [vmem:[#allocation2 + $0x18] sm:$0xf]
        %v944 = vld [vmem:[#allocation2 + $0x20] sm:$0xf]
        %v945 = vld [vmem:[#allocation2 + $0x28] sm:$0xf]
        %v946 = vld [vmem:[#allocation2 + $0x30] sm:$0xf]
        %v947 = vld [vmem:[#allocation2 + $0x38] sm:$0xf]
        %v948 = vld [vmem:[#allocation2 + $0x4] sm:$0x1]
        %v949 = vld [vmem:[#allocation2 + $0xc] sm:$0x1]
        %v950 = vld [vmem:[#allocation2 + $0x14] sm:$0x1]
        %v951 = vld [vmem:[#allocation2 + $0x1c] sm:$0x1]
        %v952 = vld [vmem:[#allocation2 + $0x24] sm:$0x1]
        %v953 = vld [vmem:[#allocation2 + $0x2c] sm:$0x1]
        %v954 = vld [vmem:[#allocation2 + $0x34] sm:$0x1]
        %v955 = vld [vmem:[#allocation2 + $0x3c] sm:$0x1]
        %vm956 = vsmask.f32 3328
        %vm957 = vsmask.f32 7440
        %vm958 = vmor %vm956, %vm957
        %v960 = vshrl.u32 %v940, 16
        %v962 = vrot.slane %v960, 4
        %v963 = vshll.u32 %v940, 16
        %v965 = vrot.slane %v963, 5
        %v966 = vor.u32 %v962, %v965
        %v967 = vrot.slane %v966, 4
        %v969 = vshll.u32 %v948, 16
        %v971 = vrot.slane %v969, 5
        %v972 = vsel %vm958, %v967, %v971
        %v974 = vshrl.u32 %v941, 16
        %v976 = vrot.slane %v974, 4
        %v977 = vshll.u32 %v941, 16
        %v979 = vrot.slane %v977, 5
        %v980 = vor.u32 %v976, %v979
        %v981 = vrot.slane %v980, 4
        %v983 = vshll.u32 %v949, 16
        %v985 = vrot.slane %v983, 5
        %v986 = vsel %vm958, %v981, %v985
        %v988 = vshrl.u32 %v942, 16
        %v990 = vrot.slane %v988, 4
        %v991 = vshll.u32 %v942, 16
        %v993 = vrot.slane %v991, 5
        %v994 = vor.u32 %v990, %v993
        %v995 = vrot.slane %v994, 4
        %v997 = vshll.u32 %v950, 16
        %v999 = vrot.slane %v997, 5
        %v1000 = vsel %vm958, %v995, %v999
        %v1002 = vshrl.u32 %v943, 16
        %v1004 = vrot.slane %v1002, 4
        %v1005 = vshll.u32 %v943, 16
        %v1007 = vrot.slane %v1005, 5
        %v1008 = vor.u32 %v1004, %v1007
        %v1009 = vrot.slane %v1008, 4
        %v1011 = vshll.u32 %v951, 16
        %v1013 = vrot.slane %v1011, 5
        %v1014 = vsel %vm958, %v1009, %v1013
        %v1016 = vshrl.u32 %v944, 16
        %v1018 = vrot.slane %v1016, 4
        %v1019 = vshll.u32 %v944, 16
        %v1021 = vrot.slane %v1019, 5
        %v1022 = vor.u32 %v1018, %v1021
        %v1023 = vrot.slane %v1022, 4
        %v1025 = vshll.u32 %v952, 16
        %v1027 = vrot.slane %v1025, 5
        %v1028 = vsel %vm958, %v1023, %v1027
        %v1030 = vshrl.u32 %v945, 16
        %v1032 = vrot.slane %v1030, 4
        %v1033 = vshll.u32 %v945, 16
        %v1035 = vrot.slane %v1033, 5
        %v1036 = vor.u32 %v1032, %v1035
        %v1037 = vrot.slane %v1036, 4
        %v1039 = vshll.u32 %v953, 16
        %v1041 = vrot.slane %v1039, 5
        %v1042 = vsel %vm958, %v1037, %v1041
        %v1044 = vshrl.u32 %v946, 16
        %v1046 = vrot.slane %v1044, 4
        %v1047 = vshll.u32 %v946, 16
        %v1049 = vrot.slane %v1047, 5
        %v1050 = vor.u32 %v1046, %v1049
        %v1051 = vrot.slane %v1050, 4
        %v1053 = vshll.u32 %v954, 16
        %v1055 = vrot.slane %v1053, 5
        %v1056 = vsel %vm958, %v1051, %v1055
        %v1058 = vshrl.u32 %v947, 16
        %v1060 = vrot.slane %v1058, 4
        %v1061 = vshll.u32 %v947, 16
        %v1063 = vrot.slane %v1061, 5
        %v1064 = vor.u32 %v1060, %v1063
        %v1065 = vrot.slane %v1064, 4
        %v1067 = vshll.u32 %v955, 16
        %v1069 = vrot.slane %v1067, 5
        %v1070 = vsel %vm958, %v1065, %v1069
        %v1071 = vld [vmem:[#allocation2] sm:$0xe]
        %v1072 = vld [vmem:[#allocation2 + $0x8] sm:$0xe]
        %v1073 = vld [vmem:[#allocation2 + $0x10] sm:$0xe]
        %v1074 = vld [vmem:[#allocation2 + $0x18] sm:$0xe]
        %v1075 = vld [vmem:[#allocation2 + $0x20] sm:$0xe]
        %v1076 = vld [vmem:[#allocation2 + $0x28] sm:$0xe]
        %v1077 = vld [vmem:[#allocation2 + $0x30] sm:$0xe]
        %v1078 = vld [vmem:[#allocation2 + $0x38] sm:$0xe]
        %vm1095 = vcmask 1042432
        %vm1096 = vcmask 1046532
        %vm1097 = vmor %vm1095, %vm1096
        %v1098 = vrot.slane %v1071, 5
        %v1099 = vrot.slane %v1098, 4
        %v1100 = vrot.slane %v948, 5
        %v1101 = vsel %vm1097, %v1099, %v1100
        %v1102 = vrot.slane %v1072, 5
        %v1103 = vrot.slane %v1102, 4
        %v1104 = vrot.slane %v949, 5
        %v1105 = vsel %vm1097, %v1103, %v1104
        %v1106 = vrot.slane %v1073, 5
        %v1107 = vrot.slane %v1106, 4
        %v1108 = vrot.slane %v950, 5
        %v1109 = vsel %vm1097, %v1107, %v1108
        %v1110 = vrot.slane %v1074, 5
        %v1111 = vrot.slane %v1110, 4
        %v1112 = vrot.slane %v951, 5
        %v1113 = vsel %vm1097, %v1111, %v1112
        %v1114 = vrot.slane %v1075, 5
        %v1115 = vrot.slane %v1114, 4
        %v1116 = vrot.slane %v952, 5
        %v1117 = vsel %vm1097, %v1115, %v1116
        %v1118 = vrot.slane %v1076, 5
        %v1119 = vrot.slane %v1118, 4
        %v1120 = vrot.slane %v953, 5
        %v1121 = vsel %vm1097, %v1119, %v1120
        %v1122 = vrot.slane %v1077, 5
        %v1123 = vrot.slane %v1122, 4
        %v1124 = vrot.slane %v954, 5
        %v1125 = vsel %vm1097, %v1123, %v1124
        %v1126 = vrot.slane %v1078, 5
        %v1127 = vrot.slane %v1126, 4
        %v1128 = vrot.slane %v955, 5
        %v1129 = vsel %vm1097, %v1127, %v1128
        %v1130 = vld [vmem:[%s724] sm:$0xf]
        %v1131 = vld [vmem:[%s724 + $0x8] sm:$0xf]
        %v1132 = vld [vmem:[%s724 + $0x10] sm:$0xf]
        %v1133 = vld [vmem:[%s724 + $0x18] sm:$0xf]
        %v1134 = vld [vmem:[%s724 + $0x20] sm:$0xf]
        %v1135 = vld [vmem:[%s724 + $0x28] sm:$0xf]
        %v1136 = vld [vmem:[%s724 + $0x30] sm:$0xf]
        %v1137 = vld [vmem:[%s724 + $0x38] sm:$0xf]
        %v1138 = vld [vmem:[%s724 + $0x4] sm:$0x1]
        %v1139 = vld [vmem:[%s724 + $0xc] sm:$0x1]
        %v1140 = vld [vmem:[%s724 + $0x14] sm:$0x1]
        %v1141 = vld [vmem:[%s724 + $0x1c] sm:$0x1]
        %v1142 = vld [vmem:[%s724 + $0x24] sm:$0x1]
        %v1143 = vld [vmem:[%s724 + $0x2c] sm:$0x1]
        %v1144 = vld [vmem:[%s724 + $0x34] sm:$0x1]
        %v1145 = vld [vmem:[%s724 + $0x3c] sm:$0x1]
        %v1147 = vshrl.u32 %v1130, 16
        %v1149 = vrot.slane %v1147, 4
        %v1150 = vshll.u32 %v1130, 16
        %v1152 = vrot.slane %v1150, 5
        %v1153 = vor.u32 %v1149, %v1152
        %v1154 = vrot.slane %v1153, 4
        %v1156 = vshll.u32 %v1138, 16
        %v1158 = vrot.slane %v1156, 5
        %v1159 = vsel %vm958, %v1154, %v1158
        %v1161 = vshrl.u32 %v1131, 16
        %v1163 = vrot.slane %v1161, 4
        %v1164 = vshll.u32 %v1131, 16
        %v1166 = vrot.slane %v1164, 5
        %v1167 = vor.u32 %v1163, %v1166
        %v1168 = vrot.slane %v1167, 4
        %v1170 = vshll.u32 %v1139, 16
        %v1172 = vrot.slane %v1170, 5
        %v1173 = vsel %vm958, %v1168, %v1172
        %v1175 = vshrl.u32 %v1132, 16
        %v1177 = vrot.slane %v1175, 4
        %v1178 = vshll.u32 %v1132, 16
        %v1180 = vrot.slane %v1178, 5
        %v1181 = vor.u32 %v1177, %v1180
        %v1182 = vrot.slane %v1181, 4
        %v1184 = vshll.u32 %v1140, 16
        %v1186 = vrot.slane %v1184, 5
        %v1187 = vsel %vm958, %v1182, %v1186
        %v1189 = vshrl.u32 %v1133, 16
        %v1191 = vrot.slane %v1189, 4
        %v1192 = vshll.u32 %v1133, 16
        %v1194 = vrot.slane %v1192, 5
        %v1195 = vor.u32 %v1191, %v1194
        %v1196 = vrot.slane %v1195, 4
        %v1198 = vshll.u32 %v1141, 16
        %v1200 = vrot.slane %v1198, 5
        %v1201 = vsel %vm958, %v1196, %v1200
        %v1203 = vshrl.u32 %v1134, 16
        %v1205 = vrot.slane %v1203, 4
        %v1206 = vshll.u32 %v1134, 16
        %v1208 = vrot.slane %v1206, 5
        %v1209 = vor.u32 %v1205, %v1208
        %v1210 = vrot.slane %v1209, 4
        %v1212 = vshll.u32 %v1142, 16
        %v1214 = vrot.slane %v1212, 5
        %v1215 = vsel %vm958, %v1210, %v1214
        %v1217 = vshrl.u32 %v1135, 16
        %v1219 = vrot.slane %v1217, 4
        %v1220 = vshll.u32 %v1135, 16
        %v1222 = vrot.slane %v1220, 5
        %v1223 = vor.u32 %v1219, %v1222
        %v1224 = vrot.slane %v1223, 4
        %v1226 = vshll.u32 %v1143, 16
        %v1228 = vrot.slane %v1226, 5
        %v1229 = vsel %vm958, %v1224, %v1228
        %v1231 = vshrl.u32 %v1136, 16
        %v1233 = vrot.slane %v1231, 4
        %v1234 = vshll.u32 %v1136, 16
        %v1236 = vrot.slane %v1234, 5
        %v1237 = vor.u32 %v1233, %v1236
        %v1238 = vrot.slane %v1237, 4
        %v1240 = vshll.u32 %v1144, 16
        %v1242 = vrot.slane %v1240, 5
        %v1243 = vsel %vm958, %v1238, %v1242
        %v1245 = vshrl.u32 %v1137, 16
        %v1247 = vrot.slane %v1245, 4
        %v1248 = vshll.u32 %v1137, 16
        %v1250 = vrot.slane %v1248, 5
        %v1251 = vor.u32 %v1247, %v1250
        %v1252 = vrot.slane %v1251, 4
        %v1254 = vshll.u32 %v1145, 16
        %v1256 = vrot.slane %v1254, 5
        %v1257 = vsel %vm958, %v1252, %v1256
        %v1258 = vld [vmem:[%s724] sm:$0xe]
        %v1259 = vld [vmem:[%s724 + $0x8] sm:$0xe]
        %v1260 = vld [vmem:[%s724 + $0x10] sm:$0xe]
        %v1261 = vld [vmem:[%s724 + $0x18] sm:$0xe]
        %v1262 = vld [vmem:[%s724 + $0x20] sm:$0xe]
        %v1263 = vld [vmem:[%s724 + $0x28] sm:$0xe]
        %v1264 = vld [vmem:[%s724 + $0x30] sm:$0xe]
        %v1265 = vld [vmem:[%s724 + $0x38] sm:$0xe]
        %v1282 = vrot.slane %v1258, 5
        %v1283 = vrot.slane %v1282, 4
        %v1284 = vrot.slane %v1138, 5
        %v1285 = vsel %vm1097, %v1283, %v1284
        %v1286 = vrot.slane %v1259, 5
        %v1287 = vrot.slane %v1286, 4
        %v1288 = vrot.slane %v1139, 5
        %v1289 = vsel %vm1097, %v1287, %v1288
        %v1290 = vrot.slane %v1260, 5
        %v1291 = vrot.slane %v1290, 4
        %v1292 = vrot.slane %v1140, 5
        %v1293 = vsel %vm1097, %v1291, %v1292
        %v1294 = vrot.slane %v1261, 5
        %v1295 = vrot.slane %v1294, 4
        %v1296 = vrot.slane %v1141, 5
        %v1297 = vsel %vm1097, %v1295, %v1296
        %v1298 = vrot.slane %v1262, 5
        %v1299 = vrot.slane %v1298, 4
        %v1300 = vrot.slane %v1142, 5
        %v1301 = vsel %vm1097, %v1299, %v1300
        %v1302 = vrot.slane %v1263, 5
        %v1303 = vrot.slane %v1302, 4
        %v1304 = vrot.slane %v1143, 5
        %v1305 = vsel %vm1097, %v1303, %v1304
        %v1306 = vrot.slane %v1264, 5
        %v1307 = vrot.slane %v1306, 4
        %v1308 = vrot.slane %v1144, 5
        %v1309 = vsel %vm1097, %v1307, %v1308
        %v1310 = vrot.slane %v1265, 5
        %v1311 = vrot.slane %v1310, 4
        %v1312 = vrot.slane %v1145, 5
        %v1313 = vsel %vm1097, %v1311, %v1312
        %s1314 = scalar_lea.vmem [#allocation2], 16
        %v1315 = vld [vmem:[%s1314] sm:$0xf]
        %v1316 = vld [vmem:[%s1314 + $0x8] sm:$0xf]
        %v1317 = vld [vmem:[%s1314 + $0x10] sm:$0xf]
        %v1318 = vld [vmem:[%s1314 + $0x18] sm:$0xf]
        %v1319 = vld [vmem:[%s1314 + $0x20] sm:$0xf]
        %v1320 = vld [vmem:[%s1314 + $0x28] sm:$0xf]
        %v1321 = vld [vmem:[%s1314 + $0x30] sm:$0xf]
        %v1322 = vld [vmem:[%s1314 + $0x38] sm:$0xf]
        %v1323 = vld [vmem:[%s1314 + $0x4] sm:$0x1]
        %v1324 = vld [vmem:[%s1314 + $0xc] sm:$0x1]
        %v1325 = vld [vmem:[%s1314 + $0x14] sm:$0x1]
        %v1326 = vld [vmem:[%s1314 + $0x1c] sm:$0x1]
        %v1327 = vld [vmem:[%s1314 + $0x24] sm:$0x1]
        %v1328 = vld [vmem:[%s1314 + $0x2c] sm:$0x1]
        %v1329 = vld [vmem:[%s1314 + $0x34] sm:$0x1]
        %v1330 = vld [vmem:[%s1314 + $0x3c] sm:$0x1]
        %v1332 = vshrl.u32 %v1315, 16
        %v1334 = vrot.slane %v1332, 4
        %v1335 = vshll.u32 %v1315, 16
        %v1337 = vrot.slane %v1335, 5
        %v1338 = vor.u32 %v1334, %v1337
        %v1339 = vrot.slane %v1338, 4
        %v1341 = vshll.u32 %v1323, 16
        %v1343 = vrot.slane %v1341, 5
        %v1344 = vsel %vm958, %v1339, %v1343
        %v1346 = vshrl.u32 %v1316, 16
        %v1348 = vrot.slane %v1346, 4
        %v1349 = vshll.u32 %v1316, 16
        %v1351 = vrot.slane %v1349, 5
        %v1352 = vor.u32 %v1348, %v1351
        %v1353 = vrot.slane %v1352, 4
        %v1355 = vshll.u32 %v1324, 16
        %v1357 = vrot.slane %v1355, 5
        %v1358 = vsel %vm958, %v1353, %v1357
        %v1360 = vshrl.u32 %v1317, 16
        %v1362 = vrot.slane %v1360, 4
        %v1363 = vshll.u32 %v1317, 16
        %v1365 = vrot.slane %v1363, 5
        %v1366 = vor.u32 %v1362, %v1365
        %v1367 = vrot.slane %v1366, 4
        %v1369 = vshll.u32 %v1325, 16
        %v1371 = vrot.slane %v1369, 5
        %v1372 = vsel %vm958, %v1367, %v1371
        %v1374 = vshrl.u32 %v1318, 16
        %v1376 = vrot.slane %v1374, 4
        %v1377 = vshll.u32 %v1318, 16
        %v1379 = vrot.slane %v1377, 5
        %v1380 = vor.u32 %v1376, %v1379
        %v1381 = vrot.slane %v1380, 4
        %v1383 = vshll.u32 %v1326, 16
        %v1385 = vrot.slane %v1383, 5
        %v1386 = vsel %vm958, %v1381, %v1385
        %v1388 = vshrl.u32 %v1319, 16
        %v1390 = vrot.slane %v1388, 4
        %v1391 = vshll.u32 %v1319, 16
        %v1393 = vrot.slane %v1391, 5
        %v1394 = vor.u32 %v1390, %v1393
        %v1395 = vrot.slane %v1394, 4
        %v1397 = vshll.u32 %v1327, 16
        %v1399 = vrot.slane %v1397, 5
        %v1400 = vsel %vm958, %v1395, %v1399
        %v1402 = vshrl.u32 %v1320, 16
        %v1404 = vrot.slane %v1402, 4
        %v1405 = vshll.u32 %v1320, 16
        %v1407 = vrot.slane %v1405, 5
        %v1408 = vor.u32 %v1404, %v1407
        %v1409 = vrot.slane %v1408, 4
        %v1411 = vshll.u32 %v1328, 16
        %v1413 = vrot.slane %v1411, 5
        %v1414 = vsel %vm958, %v1409, %v1413
        %v1416 = vshrl.u32 %v1321, 16
        %v1418 = vrot.slane %v1416, 4
        %v1419 = vshll.u32 %v1321, 16
        %v1421 = vrot.slane %v1419, 5
        %v1422 = vor.u32 %v1418, %v1421
        %v1423 = vrot.slane %v1422, 4
        %v1425 = vshll.u32 %v1329, 16
        %v1427 = vrot.slane %v1425, 5
        %v1428 = vsel %vm958, %v1423, %v1427
        %v1430 = vshrl.u32 %v1322, 16
        %v1432 = vrot.slane %v1430, 4
        %v1433 = vshll.u32 %v1322, 16
        %v1435 = vrot.slane %v1433, 5
        %v1436 = vor.u32 %v1432, %v1435
        %v1437 = vrot.slane %v1436, 4
        %v1439 = vshll.u32 %v1330, 16
        %v1441 = vrot.slane %v1439, 5
        %v1442 = vsel %vm958, %v1437, %v1441
        %v1443 = vld [vmem:[%s1314] sm:$0xe]
        %v1444 = vld [vmem:[%s1314 + $0x8] sm:$0xe]
        %v1445 = vld [vmem:[%s1314 + $0x10] sm:$0xe]
        %v1446 = vld [vmem:[%s1314 + $0x18] sm:$0xe]
        %v1447 = vld [vmem:[%s1314 + $0x20] sm:$0xe]
        %v1448 = vld [vmem:[%s1314 + $0x28] sm:$0xe]
        %v1449 = vld [vmem:[%s1314 + $0x30] sm:$0xe]
        %v1450 = vld [vmem:[%s1314 + $0x38] sm:$0xe]
        %v1467 = vrot.slane %v1443, 5
        %v1468 = vrot.slane %v1467, 4
        %v1469 = vrot.slane %v1323, 5
        %v1470 = vsel %vm1097, %v1468, %v1469
        %v1471 = vrot.slane %v1444, 5
        %v1472 = vrot.slane %v1471, 4
        %v1473 = vrot.slane %v1324, 5
        %v1474 = vsel %vm1097, %v1472, %v1473
        %v1475 = vrot.slane %v1445, 5
        %v1476 = vrot.slane %v1475, 4
        %v1477 = vrot.slane %v1325, 5
        %v1478 = vsel %vm1097, %v1476, %v1477
        %v1479 = vrot.slane %v1446, 5
        %v1480 = vrot.slane %v1479, 4
        %v1481 = vrot.slane %v1326, 5
        %v1482 = vsel %vm1097, %v1480, %v1481
        %v1483 = vrot.slane %v1447, 5
        %v1484 = vrot.slane %v1483, 4
        %v1485 = vrot.slane %v1327, 5
        %v1486 = vsel %vm1097, %v1484, %v1485
        %v1487 = vrot.slane %v1448, 5
        %v1488 = vrot.slane %v1487, 4
        %v1489 = vrot.slane %v1328, 5
        %v1490 = vsel %vm1097, %v1488, %v1489
        %v1491 = vrot.slane %v1449, 5
        %v1492 = vrot.slane %v1491, 4
        %v1493 = vrot.slane %v1329, 5
        %v1494 = vsel %vm1097, %v1492, %v1493
        %v1495 = vrot.slane %v1450, 5
        %v1496 = vrot.slane %v1495, 4
        %v1497 = vrot.slane %v1330, 5
        %v1498 = vsel %vm1097, %v1496, %v1497
        %v1507 = vunpack.c.l.b16 %v940
        %v1508 = vunpack.c.l.b16 %v941
        %v1509 = vunpack.c.l.b16 %v942
        %v1510 = vunpack.c.l.b16 %v943
        %v1511 = vunpack.c.l.b16 %v944
        %v1512 = vunpack.c.l.b16 %v945
        %v1513 = vunpack.c.l.b16 %v946
        %v1514 = vunpack.c.l.b16 %v947
        %v1515 = vpack.c.b16 %v1508, %v1507
        %v1516 = vpack.c.b16 %v1510, %v1509
        %v1517 = vpack.c.b16 %v1512, %v1511
        %v1518 = vpack.c.b16 %v1514, %v1513
        %v1519 = vunpack.c.l.b16 %v972
        %v1520 = vunpack.c.l.b16 %v986
        %v1521 = vunpack.c.l.b16 %v1000
        %v1522 = vunpack.c.l.b16 %v1014
        %v1523 = vunpack.c.l.b16 %v1028
        %v1524 = vunpack.c.l.b16 %v1042
        %v1525 = vunpack.c.l.b16 %v1056
        %v1526 = vunpack.c.l.b16 %v1070
        %v1527 = vpack.c.b16 %v1520, %v1519
        %v1528 = vpack.c.b16 %v1522, %v1521
        %v1529 = vpack.c.b16 %v1524, %v1523
        %v1530 = vpack.c.b16 %v1526, %v1525
        %1531 = vrot.lane.b32.xlu0 %v1527, 8
        %v1532 = vpop.permute.xlu0 %1531
        %1533 = vrot.lane.b32.xlu0 %v1528, 8
        %v1534 = vpop.permute.xlu0 %1533
        %1535 = vrot.lane.b32.xlu0 %v1529, 8
        %v1536 = vpop.permute.xlu0 %1535
        %1537 = vrot.lane.b32.xlu0 %v1530, 8
        %v1538 = vpop.permute.xlu0 %1537
        %v1539 = vunpack.c.l.b16 %v1101
        %v1540 = vunpack.c.l.b16 %v1105
        %v1541 = vunpack.c.l.b16 %v1109
        %v1542 = vunpack.c.l.b16 %v1113
        %v1543 = vunpack.c.l.b16 %v1117
        %v1544 = vunpack.c.l.b16 %v1121
        %v1545 = vunpack.c.l.b16 %v1125
        %v1546 = vunpack.c.l.b16 %v1129
        %v1547 = vpack.c.b16 %v1540, %v1539
        %v1548 = vpack.c.b16 %v1542, %v1541
        %v1549 = vpack.c.b16 %v1544, %v1543
        %v1550 = vpack.c.b16 %v1546, %v1545
        %1551 = vrot.lane.b32.xlu0 %v1547, 16
        %v1552 = vpop.permute.xlu0 %1551
        %1553 = vrot.lane.b32.xlu0 %v1548, 16
        %v1554 = vpop.permute.xlu0 %1553
        %1555 = vrot.lane.b32.xlu0 %v1549, 16
        %v1556 = vpop.permute.xlu0 %1555
        %1557 = vrot.lane.b32.xlu0 %v1550, 16
        %v1558 = vpop.permute.xlu0 %1557
        %v1567 = vunpack.c.l.b16 %v1130
        %v1568 = vunpack.c.l.b16 %v1131
        %v1569 = vunpack.c.l.b16 %v1132
        %v1570 = vunpack.c.l.b16 %v1133
        %v1571 = vunpack.c.l.b16 %v1134
        %v1572 = vunpack.c.l.b16 %v1135
        %v1573 = vunpack.c.l.b16 %v1136
        %v1574 = vunpack.c.l.b16 %v1137
        %v1575 = vpack.c.b16 %v1568, %v1567
        %v1576 = vpack.c.b16 %v1570, %v1569
        %v1577 = vpack.c.b16 %v1572, %v1571
        %v1578 = vpack.c.b16 %v1574, %v1573
        %1579 = vrot.lane.b32.xlu0 %v1575, 24
        %v1580 = vpop.permute.xlu0 %1579
        %1581 = vrot.lane.b32.xlu0 %v1576, 24
        %v1582 = vpop.permute.xlu0 %1581
        %1583 = vrot.lane.b32.xlu0 %v1577, 24
        %v1584 = vpop.permute.xlu0 %1583
        %1585 = vrot.lane.b32.xlu0 %v1578, 24
        %v1586 = vpop.permute.xlu0 %1585
        %v1587 = vunpack.c.l.b16 %v1159
        %v1588 = vunpack.c.l.b16 %v1173
        %v1589 = vunpack.c.l.b16 %v1187
        %v1590 = vunpack.c.l.b16 %v1201
        %v1591 = vunpack.c.l.b16 %v1215
        %v1592 = vunpack.c.l.b16 %v1229
        %v1593 = vunpack.c.l.b16 %v1243
        %v1594 = vunpack.c.l.b16 %v1257
        %v1595 = vpack.c.b16 %v1588, %v1587
        %v1596 = vpack.c.b16 %v1590, %v1589
        %v1597 = vpack.c.b16 %v1592, %v1591
        %v1598 = vpack.c.b16 %v1594, %v1593
        %1599 = vrot.lane.b32.xlu0 %v1595, 32
        %v1600 = vpop.permute.xlu0 %1599
        %1601 = vrot.lane.b32.xlu0 %v1596, 32
        %v1602 = vpop.permute.xlu0 %1601
        %1603 = vrot.lane.b32.xlu0 %v1597, 32
        %v1604 = vpop.permute.xlu0 %1603
        %1605 = vrot.lane.b32.xlu0 %v1598, 32
        %v1606 = vpop.permute.xlu0 %1605
        %v1607 = vunpack.c.l.b16 %v1285
        %v1608 = vunpack.c.l.b16 %v1289
        %v1609 = vunpack.c.l.b16 %v1293
        %v1610 = vunpack.c.l.b16 %v1297
        %v1611 = vunpack.c.l.b16 %v1301
        %v1612 = vunpack.c.l.b16 %v1305
        %v1613 = vunpack.c.l.b16 %v1309
        %v1614 = vunpack.c.l.b16 %v1313
        %v1615 = vpack.c.b16 %v1608, %v1607
        %v1616 = vpack.c.b16 %v1610, %v1609
        %v1617 = vpack.c.b16 %v1612, %v1611
        %v1618 = vpack.c.b16 %v1614, %v1613
        %1619 = vrot.lane.b32.xlu0 %v1615, 40
        %v1620 = vpop.permute.xlu0 %1619
        %1621 = vrot.lane.b32.xlu0 %v1616, 40
        %v1622 = vpop.permute.xlu0 %1621
        %1623 = vrot.lane.b32.xlu0 %v1617, 40
        %v1624 = vpop.permute.xlu0 %1623
        %1625 = vrot.lane.b32.xlu0 %v1618, 40
        %v1626 = vpop.permute.xlu0 %1625
        %v1635 = vunpack.c.l.b16 %v1315
        %v1636 = vunpack.c.l.b16 %v1316
        %v1637 = vunpack.c.l.b16 %v1317
        %v1638 = vunpack.c.l.b16 %v1318
        %v1639 = vunpack.c.l.b16 %v1319
        %v1640 = vunpack.c.l.b16 %v1320
        %v1641 = vunpack.c.l.b16 %v1321
        %v1642 = vunpack.c.l.b16 %v1322
        %v1643 = vpack.c.b16 %v1636, %v1635
        %v1644 = vpack.c.b16 %v1638, %v1637
        %v1645 = vpack.c.b16 %v1640, %v1639
        %v1646 = vpack.c.b16 %v1642, %v1641
        %1647 = vrot.lane.b32.xlu0 %v1643, 48
        %v1648 = vpop.permute.xlu0 %1647
        %1649 = vrot.lane.b32.xlu0 %v1644, 48
        %v1650 = vpop.permute.xlu0 %1649
        %1651 = vrot.lane.b32.xlu0 %v1645, 48
        %v1652 = vpop.permute.xlu0 %1651
        %1653 = vrot.lane.b32.xlu0 %v1646, 48
        %v1654 = vpop.permute.xlu0 %1653
        %v1655 = vunpack.c.l.b16 %v1344
        %v1656 = vunpack.c.l.b16 %v1358
        %v1657 = vunpack.c.l.b16 %v1372
        %v1658 = vunpack.c.l.b16 %v1386
        %v1659 = vunpack.c.l.b16 %v1400
        %v1660 = vunpack.c.l.b16 %v1414
        %v1661 = vunpack.c.l.b16 %v1428
        %v1662 = vunpack.c.l.b16 %v1442
        %v1663 = vpack.c.b16 %v1656, %v1655
        %v1664 = vpack.c.b16 %v1658, %v1657
        %v1665 = vpack.c.b16 %v1660, %v1659
        %v1666 = vpack.c.b16 %v1662, %v1661
        %1667 = vrot.lane.b32.xlu0 %v1663, 56
        %v1668 = vpop.permute.xlu0 %1667
        %1669 = vrot.lane.b32.xlu0 %v1664, 56
        %v1670 = vpop.permute.xlu0 %1669
        %1671 = vrot.lane.b32.xlu0 %v1665, 56
        %v1672 = vpop.permute.xlu0 %1671
        %1673 = vrot.lane.b32.xlu0 %v1666, 56
        %v1674 = vpop.permute.xlu0 %1673
        %v1675 = vunpack.c.l.b16 %v1470
        %v1676 = vunpack.c.l.b16 %v1474
        %v1677 = vunpack.c.l.b16 %v1478
        %v1678 = vunpack.c.l.b16 %v1482
        %v1679 = vunpack.c.l.b16 %v1486
        %v1680 = vunpack.c.l.b16 %v1490
        %v1681 = vunpack.c.l.b16 %v1494
        %v1682 = vunpack.c.l.b16 %v1498
        %v1683 = vpack.c.b16 %v1676, %v1675
        %v1684 = vpack.c.b16 %v1678, %v1677
        %v1685 = vpack.c.b16 %v1680, %v1679
        %v1686 = vpack.c.b16 %v1682, %v1681
        %1687 = vrot.lane.b32.xlu0 %v1683, 64
        %v1688 = vpop.permute.xlu0 %1687
        %1689 = vrot.lane.b32.xlu0 %v1684, 64
        %v1690 = vpop.permute.xlu0 %1689
        %1691 = vrot.lane.b32.xlu0 %v1685, 64
        %v1692 = vpop.permute.xlu0 %1691
        %1693 = vrot.lane.b32.xlu0 %v1686, 64
        %v1694 = vpop.permute.xlu0 %1693
        %v1697 = vsel %vm311, %v1515, %v1532
        %v1700 = vsel %vm311, %v1516, %v1534
        %v1703 = vsel %vm311, %v1517, %v1536
        %v1706 = vsel %vm311, %v1518, %v1538
        %v1708 = vsel %vm329, %v1697, %v1552
        %v1710 = vsel %vm329, %v1700, %v1554
        %v1712 = vsel %vm329, %v1703, %v1556
        %v1714 = vsel %vm329, %v1706, %v1558
        %v1716 = vsel %vm343, %v1708, %v1580
        %v1718 = vsel %vm343, %v1710, %v1582
        %v1720 = vsel %vm343, %v1712, %v1584
        %v1722 = vsel %vm343, %v1714, %v1586
        %v1724 = vsel %vm357, %v1716, %v1600
        %v1726 = vsel %vm357, %v1718, %v1602
        %v1728 = vsel %vm357, %v1720, %v1604
        %v1730 = vsel %vm357, %v1722, %v1606
        %vm1731 = vcmask 326656
        %v1733 = vsel %vm1731, %v1724, %v1620
        %v1735 = vsel %vm1731, %v1726, %v1622
        %v1737 = vsel %vm1731, %v1728, %v1624
        %v1739 = vsel %vm1731, %v1730, %v1626
        %vm1740 = vcmask 392192
        %v1742 = vsel %vm1740, %v1733, %v1648
        %v1744 = vsel %vm1740, %v1735, %v1650
        %v1746 = vsel %vm1740, %v1737, %v1652
        %v1748 = vsel %vm1740, %v1739, %v1654
        %vm1749 = vcmask 457728
        %v1751 = vsel %vm1749, %v1742, %v1668
        %v1753 = vsel %vm1749, %v1744, %v1670
        %v1755 = vsel %vm1749, %v1746, %v1672
        %v1757 = vsel %vm1749, %v1748, %v1674
        %vm1758 = vcmask 523264
        %v1760 = vsel %vm1758, %v1751, %v1688
        %v1762 = vsel %vm1758, %v1753, %v1690
        %v1764 = vsel %vm1758, %v1755, %v1692
        %v1766 = vsel %vm1758, %v1757, %v1694
        %v1767 = vld [vmem:[%s2] sm:$0xf]
        %v1768 = vld [vmem:[%s2 + $0x4] sm:$0xf]
        %v1769 = vld [vmem:[%s2 + $0x8] sm:$0xf]
        %v1770 = vld [vmem:[%s2 + $0xc] sm:$0xf]
        %v1771 = vld [vmem:[%s2 + $0x10] sm:$0xf]
        %v1772 = vld [vmem:[%s2 + $0x14] sm:$0xf]
        %v1773 = vld [vmem:[%s2 + $0x18] sm:$0xf]
        %v1774 = vld [vmem:[%s2 + $0x1c] sm:$0xf]
        %v1775 = vld [vmem:[%s2 + $0x20] sm:$0xf]
        %v1785 = vunpack.c.l.b16 %v1767
        %v1786 = vunpack.c.l.b16 %v1768
        %v1787 = vunpack.c.l.b16 %v1769
        %v1788 = vunpack.c.l.b16 %v1770
        %v1789 = vunpack.c.l.b16 %v1771
        %v1790 = vunpack.c.l.b16 %v1772
        %v1791 = vunpack.c.l.b16 %v1773
        %v1792 = vunpack.c.l.b16 %v1774
        %v1793 = vunpack.c.l.b16 %v1775
        %v1794 = vpack.c.b16 %v1786, %v1785
        %v1795 = vpack.c.b16 %v1788, %v1787
        %v1796 = vpack.c.b16 %v1790, %v1789
        %v1797 = vpack.c.b16 %v1792, %v1791
        %v1798 = vpack.c.b16 %v1793, %v1793
        %vm1803 = vcmask 588800
        %v1804 = vsel %vm1803, %v1760, 0
        %v1806 = vsel %vm1803, %v1762, 0
        %v1808 = vsel %vm1803, %v1764, 0
        %v1810 = vsel %vm1803, %v1766, 0
        %vm1812 = vcmask 1043456
        %v1814 = vsel %vm1812, %v1798, 0
        %1816 = vmatprep.subr.bf16.mxu0 0
        %1817 = vmatpush1.bf16.msra.mxu0 0
        %1818 = vmatprep.subr.bf16.mxu0 0
        %1819 = vmatpush1.bf16.msra.mxu0 0
        %1820 = vmatprep.subr.bf16.mxu0 0
        %1821 = vmatpush1.bf16.msra.mxu0 0
        %1822 = vmatprep.subr.bf16.mxu0 0
        %1823 = vmatpush1.bf16.msra.mxu0 %v1814
        %1824 = vmatprep.subr.bf16.mxu0 0
        %1825 = vmatpush1.bf16.msra.mxu0 %v1797
        %1826 = vmatprep.subr.bf16.mxu0 0
        %1827 = vmatpush1.bf16.msra.mxu0 %v1796
        %1828 = vmatprep.subr.bf16.mxu0 0
        %1829 = vmatpush1.bf16.msra.mxu0 %v1795
        %1830 = vmatprep.subr.bf16.mxu0 0
        %1831 = vmatpush1.bf16.msra.mxu0 %v1794
        %1832 = vmatprep.subr.bf16.mxu0 0
        %1833 = vmatpush2.bf16.msra.mxu0 0
        %1834 = vmatprep.subr.bf16.mxu0 0
        %1835 = vmatpush2.bf16.msra.mxu0 0
        %1836 = vmatprep.subr.bf16.mxu0 0
        %1837 = vmatpush2.bf16.msra.mxu0 0
        %1838 = vmatprep.subr.bf16.mxu0 0
        %1839 = vmatpush2.bf16.msra.mxu0 0
        %1840 = vmatprep.subr.bf16.mxu0 0
        %1841 = vmatpush2.bf16.msra.mxu0 0
        %1842 = vmatprep.subr.bf16.mxu0 0
        %1843 = vmatpush2.bf16.msra.mxu0 0
        %1844 = vmatprep.subr.bf16.mxu0 0
        %1845 = vmatpush2.bf16.msra.mxu0 0
        %1846 = vmatprep.subr.bf16.mxu0 0
        %1847 = vmatpush2.bf16.msra.mxu0 0
        %1848 = vmatprep.mubr.bf16.mxu0 0
        %1849 = vmatmul.mubr.bf16.gmra.mxu0 %v1804
        %v1850 = vpop.f32.mrf.mxu0
        %v1851 = vadd.f32 0.0, %v1850
        %v1852 = vpop.f32.mrf.mxu0
        %v1853 = vpop.f32.mrf.mxu0
        %v1854 = vadd.f32 0.0, %v1853
        %v1855 = vpop.f32.mrf.mxu0
        %1856 = vmatprep.mubr.bf16.mxu0 0
        %1857 = vmatmul.mubr.bf16.gmra.mxu0 %v1806
        %v1858 = vpop.f32.mrf.mxu0
        %v1859 = vadd.f32 0.0, %v1858
        %v1860 = vpop.f32.mrf.mxu0
        %v1861 = vpop.f32.mrf.mxu0
        %v1862 = vadd.f32 0.0, %v1861
        %v1863 = vpop.f32.mrf.mxu0
        %1864 = vmatprep.mubr.bf16.mxu0 0
        %1865 = vmatmul.mubr.bf16.gmra.mxu0 %v1808
        %v1866 = vpop.f32.mrf.mxu0
        %v1867 = vadd.f32 0.0, %v1866
        %v1868 = vpop.f32.mrf.mxu0
        %v1869 = vpop.f32.mrf.mxu0
        %v1870 = vadd.f32 0.0, %v1869
        %v1871 = vpop.f32.mrf.mxu0
        %1872 = vmatprep.mubr.bf16.mxu0 0
        %1873 = vmatmul.mubr.bf16.gmra.mxu0 %v1810
        %v1874 = vpop.f32.mrf.mxu0
        %v1875 = vadd.f32 0.0, %v1874
        %v1876 = vpop.f32.mrf.mxu0
        %v1877 = vpop.f32.mrf.mxu0
        %v1878 = vadd.f32 0.0, %v1877
        %v1879 = vpop.f32.mrf.mxu0
        %1880 = vdwg.mxu0
        %v1881 = vsel %vm306, %v1851, 0.0
        %v1882 = vsel %vm306, %v1854, 0.0
        %v1883 = vadd.f32 %v1881, %v1882
        %v1884 = vsel %vm306, %v1859, 0.0
        %v1885 = vadd.f32 %v1883, %v1884
        %v1886 = vsel %vm306, %v1862, 0.0
        %v1887 = vadd.f32 %v1885, %v1886
        %v1888 = vsel %vm306, %v1867, 0.0
        %v1889 = vadd.f32 %v1887, %v1888
        %v1890 = vsel %vm306, %v1870, 0.0
        %v1891 = vadd.f32 %v1889, %v1890
        %v1892 = vsel %vm306, %v1875, 0.0
        %v1893 = vadd.f32 %v1891, %v1892
        %v1894 = vsel %vm306, %v1878, 0.0
        %v1895 = vadd.f32 %v1893, %v1894
        %1896 = vadd.xlane.f32.xlu0 %v1895
        %v1897 = vpop.xlane.xlu0 %1896
        %v1898 = vrot.slane %v1897, 4
        %v1899 = vadd.f32 %v1897, %v1898
        %v1900 = vrot.slane %v1899, 2
        %v1901 = vadd.f32 %v1899, %v1900
        %v1902 = vrot.slane %v1901, 1
        %v1903 = vadd.f32 %v1901, %v1902
        %v1904 = vmul.f32 %v1903, %v487
        %v1905 = vsub.f32 %v1851, %v1904
        %v1906 = vsub.f32 %v1854, %v1904
        %v1907 = vsub.f32 %v1859, %v1904
        %v1908 = vsub.f32 %v1862, %v1904
        %v1909 = vsub.f32 %v1867, %v1904
        %v1910 = vsub.f32 %v1870, %v1904
        %v1911 = vsub.f32 %v1875, %v1904
        %v1912 = vsub.f32 %v1878, %v1904
        %v1913 = vmul.f32 %v1905, %v1905
        %v1914 = vmul.f32 %v1906, %v1906
        %v1915 = vmul.f32 %v1907, %v1907
        %v1916 = vmul.f32 %v1908, %v1908
        %v1917 = vmul.f32 %v1909, %v1909
        %v1918 = vmul.f32 %v1910, %v1910
        %v1919 = vmul.f32 %v1911, %v1911
        %v1920 = vmul.f32 %v1912, %v1912
        %v1921 = vsel %vm306, %v1913, 0.0
        %v1922 = vsel %vm306, %v1914, 0.0
        %v1923 = vadd.f32 %v1921, %v1922
        %v1924 = vsel %vm306, %v1915, 0.0
        %v1925 = vadd.f32 %v1923, %v1924
        %v1926 = vsel %vm306, %v1916, 0.0
        %v1927 = vadd.f32 %v1925, %v1926
        %v1928 = vsel %vm306, %v1917, 0.0
        %v1929 = vadd.f32 %v1927, %v1928
        %v1930 = vsel %vm306, %v1918, 0.0
        %v1931 = vadd.f32 %v1929, %v1930
        %v1932 = vsel %vm306, %v1919, 0.0
        %v1933 = vadd.f32 %v1931, %v1932
        %v1934 = vsel %vm306, %v1920, 0.0
        %v1935 = vadd.f32 %v1933, %v1934
        %1936 = vadd.xlane.f32.xlu0 %v1935
        %v1937 = vpop.xlane.xlu0 %1936
        %v1938 = vrot.slane %v1937, 4
        %v1939 = vadd.f32 %v1937, %v1938
        %v1940 = vrot.slane %v1939, 2
        %v1941 = vadd.f32 %v1939, %v1940
        %v1942 = vrot.slane %v1941, 1
        %v1943 = vadd.f32 %v1941, %v1942
        %v1944 = vmul.f32 %v1943, %v487
        %v1945 = vadd.f32 %v1944, 1e-05
        %v1946 = vrsqrt.pop %v1945
        %v1947 = vmul.f32 %v1905, %v1946
        %v1948 = vmul.f32 %v1906, %v1946
        %v1949 = vmul.f32 %v1907, %v1946
        %v1950 = vmul.f32 %v1908, %v1946
        %v1951 = vmul.f32 %v1909, %v1946
        %v1952 = vmul.f32 %v1910, %v1946
        %v1953 = vmul.f32 %v1911, %v1946
        %v1954 = vmul.f32 %v1912, %v1946
        %1963 = vrot.lane.b32.xlu0 %v1851, 124
        %v1964 = vpop.permute.xlu0 %1963
        %1965 = vrot.lane.b32.xlu0 %v1854, 124
        %v1966 = vpop.permute.xlu0 %1965
        %1967 = vrot.lane.b32.xlu0 %v1859, 124
        %v1968 = vpop.permute.xlu0 %1967
        %1969 = vrot.lane.b32.xlu0 %v1862, 124
        %v1970 = vpop.permute.xlu0 %1969
        %1971 = vrot.lane.b32.xlu0 %v1867, 124
        %v1972 = vpop.permute.xlu0 %1971
        %1973 = vrot.lane.b32.xlu0 %v1870, 124
        %v1974 = vpop.permute.xlu0 %1973
        %1975 = vrot.lane.b32.xlu0 %v1875, 124
        %v1976 = vpop.permute.xlu0 %1975
        %1977 = vrot.lane.b32.xlu0 %v1878, 124
        %v1978 = vpop.permute.xlu0 %1977
        %v1987 = vsel %vm306, %v1964, 0.0
        %v1988 = vsel %vm306, %v1966, 0.0
        %v1989 = vadd.f32 %v1987, %v1988
        %v1990 = vsel %vm306, %v1968, 0.0
        %v1991 = vadd.f32 %v1989, %v1990
        %v1992 = vsel %vm306, %v1970, 0.0
        %v1993 = vadd.f32 %v1991, %v1992
        %v1994 = vsel %vm306, %v1972, 0.0
        %v1995 = vadd.f32 %v1993, %v1994
        %v1996 = vsel %vm306, %v1974, 0.0
        %v1997 = vadd.f32 %v1995, %v1996
        %v1998 = vsel %vm306, %v1976, 0.0
        %v1999 = vadd.f32 %v1997, %v1998
        %v2000 = vsel %vm306, %v1978, 0.0
        %v2001 = vadd.f32 %v1999, %v2000
        %2002 = vadd.xlane.f32.xlu0 %v2001
        %v2003 = vpop.xlane.xlu0 %2002
        %v2004 = vrot.slane %v2003, 4
        %v2005 = vadd.f32 %v2003, %v2004
        %v2006 = vrot.slane %v2005, 2
        %v2007 = vadd.f32 %v2005, %v2006
        %v2008 = vrot.slane %v2007, 1
        %v2009 = vadd.f32 %v2007, %v2008
        %v2010 = vmul.f32 %v2009, %v487
        %v2011 = vsub.f32 %v1851, %v2010
        %v2012 = vsub.f32 %v1854, %v2010
        %v2013 = vsub.f32 %v1859, %v2010
        %v2014 = vsub.f32 %v1862, %v2010
        %v2015 = vsub.f32 %v1867, %v2010
        %v2016 = vsub.f32 %v1870, %v2010
        %v2017 = vsub.f32 %v1875, %v2010
        %v2018 = vsub.f32 %v1878, %v2010
        %v2019 = vmul.f32 %v2011, %v2011
        %v2020 = vmul.f32 %v2012, %v2012
        %v2021 = vmul.f32 %v2013, %v2013
        %v2022 = vmul.f32 %v2014, %v2014
        %v2023 = vmul.f32 %v2015, %v2015
        %v2024 = vmul.f32 %v2016, %v2016
        %v2025 = vmul.f32 %v2017, %v2017
        %v2026 = vmul.f32 %v2018, %v2018
        %2035 = vrot.lane.b32.xlu0 %v2019, 124
        %v2036 = vpop.permute.xlu0 %2035
        %2037 = vrot.lane.b32.xlu0 %v2020, 124
        %v2038 = vpop.permute.xlu0 %2037
        %2039 = vrot.lane.b32.xlu0 %v2021, 124
        %v2040 = vpop.permute.xlu0 %2039
        %2041 = vrot.lane.b32.xlu0 %v2022, 124
        %v2042 = vpop.permute.xlu0 %2041
        %2043 = vrot.lane.b32.xlu0 %v2023, 124
        %v2044 = vpop.permute.xlu0 %2043
        %2045 = vrot.lane.b32.xlu0 %v2024, 124
        %v2046 = vpop.permute.xlu0 %2045
        %2047 = vrot.lane.b32.xlu0 %v2025, 124
        %v2048 = vpop.permute.xlu0 %2047
        %2049 = vrot.lane.b32.xlu0 %v2026, 124
        %v2050 = vpop.permute.xlu0 %2049
        %v2059 = vsel %vm306, %v2036, 0.0
        %v2060 = vsel %vm306, %v2038, 0.0
        %v2061 = vadd.f32 %v2059, %v2060
        %v2062 = vsel %vm306, %v2040, 0.0
        %v2063 = vadd.f32 %v2061, %v2062
        %v2064 = vsel %vm306, %v2042, 0.0
        %v2065 = vadd.f32 %v2063, %v2064
        %v2066 = vsel %vm306, %v2044, 0.0
        %v2067 = vadd.f32 %v2065, %v2066
        %v2068 = vsel %vm306, %v2046, 0.0
        %v2069 = vadd.f32 %v2067, %v2068
        %v2070 = vsel %vm306, %v2048, 0.0
        %v2071 = vadd.f32 %v2069, %v2070
        %v2072 = vsel %vm306, %v2050, 0.0
        %v2073 = vadd.f32 %v2071, %v2072
        %2074 = vadd.xlane.f32.xlu0 %v2073
        %v2075 = vpop.xlane.xlu0 %2074
        %v2076 = vrot.slane %v2075, 4
        %v2077 = vadd.f32 %v2075, %v2076
        %v2078 = vrot.slane %v2077, 2
        %v2079 = vadd.f32 %v2077, %v2078
        %v2080 = vrot.slane %v2079, 1
        %v2081 = vadd.f32 %v2079, %v2080
        %v2082 = vmul.f32 %v2081, %v487
        %v2083 = vadd.f32 %v2082, 1e-05
        %v2084 = vrsqrt.pop %v2083
        %v2085 = vmul.f32 %v2011, %v2084
        %v2086 = vmul.f32 %v2012, %v2084
        %v2087 = vmul.f32 %v2013, %v2084
        %v2088 = vmul.f32 %v2014, %v2084
        %v2089 = vmul.f32 %v2015, %v2084
        %v2090 = vmul.f32 %v2016, %v2084
        %v2091 = vmul.f32 %v2017, %v2084
        %v2092 = vmul.f32 %v2018, %v2084
        %v2093 = vsel %vm306, %v1947, %v2085
        %v2094 = vsel %vm306, %v1948, %v2086
        %v2095 = vsel %vm306, %v1949, %v2087
        %v2096 = vsel %vm306, %v1950, %v2088
        %v2097 = vsel %vm306, %v1951, %v2089
        %v2098 = vsel %vm306, %v1952, %v2090
        %v2099 = vsel %vm306, %v1953, %v2091
        %v2100 = vsel %vm306, %v1954, %v2092
        %v2101 = vlaneseq
        %v2102 = vshrl.u32 %v2101, 7
        %v2103 = vsub.s32 0, %v2102
        %v2104 = vrot.slane %v199, %v2103
        %v2105 = vmul.f32 %v2093, %v2104
        %v2106 = vmul.f32 %v2094, %v2104
        %v2107 = vmul.f32 %v2095, %v2104
        %v2108 = vmul.f32 %v2096, %v2104
        %v2109 = vmul.f32 %v2097, %v2104
        %v2110 = vmul.f32 %v2098, %v2104
        %v2111 = vmul.f32 %v2099, %v2104
        %v2112 = vmul.f32 %v2100, %v2104
        %v2113 = vlaneseq
        %v2114 = vshrl.u32 %v2113, 7
        %v2115 = vsub.s32 0, %v2114
        %v2116 = vrot.slane %v200, %v2115
        %v2117 = vadd.f32 %v2105, %v2116
        %v2118 = vadd.f32 %v2106, %v2116
        %v2119 = vadd.f32 %v2107, %v2116
        %v2120 = vadd.f32 %v2108, %v2116
        %v2121 = vadd.f32 %v2109, %v2116
        %v2122 = vadd.f32 %v2110, %v2116
        %v2123 = vadd.f32 %v2111, %v2116
        %v2124 = vadd.f32 %v2112, %v2116
        %v2125 = vld [vmem:[%s195] sm:$0xff]
        %v2126 = vld [vmem:[%s195 + $0x10] sm:$0xff]
        %v2127 = vld [vmem:[%s195 + $0x20] sm:$0xff]
        %v2128 = vld [vmem:[%s195 + $0x30] sm:$0xff]
        %v2129 = vld [vmem:[%s195 + $0x40] sm:$0xff]
        %v2130 = vld [vmem:[%s195 + $0x50] sm:$0xff]
        %v2131 = vld [vmem:[%s195 + $0x60] sm:$0xff]
        %v2132 = vld [vmem:[%s195 + $0x70] sm:$0xff]
        %2141 = vrot.lane.b32.xlu0 %v2125, 118
        %v2142 = vpop.permute.xlu0 %2141
        %2143 = vrot.lane.b32.xlu0 %v2126, 118
        %v2144 = vpop.permute.xlu0 %2143
        %2145 = vrot.lane.b32.xlu0 %v2127, 118
        %v2146 = vpop.permute.xlu0 %2145
        %2147 = vrot.lane.b32.xlu0 %v2128, 118
        %v2148 = vpop.permute.xlu0 %2147
        %2149 = vrot.lane.b32.xlu0 %v2129, 118
        %v2150 = vpop.permute.xlu0 %2149
        %2151 = vrot.lane.b32.xlu0 %v2130, 118
        %v2152 = vpop.permute.xlu0 %2151
        %2153 = vrot.lane.b32.xlu0 %v2131, 118
        %v2154 = vpop.permute.xlu0 %2153
        %2155 = vrot.lane.b32.xlu0 %v2132, 118
        %v2156 = vpop.permute.xlu0 %2155
        %vm2165 = vcmask 15360
        %v2166 = vsel %vm2165, 0.0, %v2142
        %v2167 = vsel %vm2165, 0.0, %v2144
        %v2168 = vsel %vm2165, 0.0, %v2146
        %v2169 = vsel %vm2165, 0.0, %v2148
        %v2170 = vsel %vm2165, 0.0, %v2150
        %v2171 = vsel %vm2165, 0.0, %v2152
        %v2172 = vsel %vm2165, 0.0, %v2154
        %v2173 = vsel %vm2165, 0.0, %v2156
        %vm2174 = vcmask 48128
        %v2175 = vsel %vm2174, %v2166, 0.0
        %v2176 = vsel %vm2174, %v2167, 0.0
        %v2177 = vsel %vm2174, %v2168, 0.0
        %v2178 = vsel %vm2174, %v2169, 0.0
        %v2179 = vsel %vm2174, %v2170, 0.0
        %v2180 = vsel %vm2174, %v2171, 0.0
        %v2181 = vsel %vm2174, %v2172, 0.0
        %v2182 = vsel %vm2174, %v2173, 0.0
        %v2183 = vadd.f32 %v2117, %v2175
        %v2184 = vadd.f32 %v2118, %v2176
        %v2185 = vadd.f32 %v2119, %v2177
        %v2186 = vadd.f32 %v2120, %v2178
        %v2187 = vadd.f32 %v2121, %v2179
        %v2188 = vadd.f32 %v2122, %v2180
        %v2189 = vadd.f32 %v2123, %v2181
        %v2190 = vadd.f32 %v2124, %v2182
        %v2191 = vmax.f32 %v2183, 0.0
        %v2192 = vmax.f32 %v2184, 0.0
        %v2193 = vmax.f32 %v2185, 0.0
        %v2194 = vmax.f32 %v2186, 0.0
        %v2195 = vmax.f32 %v2187, 0.0
        %v2196 = vmax.f32 %v2188, 0.0
        %v2197 = vmax.f32 %v2189, 0.0
        %v2198 = vmax.f32 %v2190, 0.0
        %2199 = vxpose.xlu0.b32.start [1/16] %v2191, 128
        %2200 = vxpose.xlu0.b32.cont [2/16] %v2192, 128
        %2201 = vxpose.xlu0.b32.cont [3/16] %v2193, 128
        %2202 = vxpose.xlu0.b32.cont [4/16] %v2194, 128
        %2203 = vxpose.xlu0.b32.cont [5/16] %v2195, 128
        %2204 = vxpose.xlu0.b32.cont [6/16] %v2196, 128
        %2205 = vxpose.xlu0.b32.cont [7/16] %v2197, 128
        %2206 = vxpose.xlu0.b32.cont [8/16] %v2198, 128
        %2207 = vxpose.xlu0.b32.cont [9/16] 0.0, 128
        %2208 = vxpose.xlu0.b32.cont [10/16] 0.0, 128
        %2209 = vxpose.xlu0.b32.cont [11/16] 0.0, 128
        %2210 = vxpose.xlu0.b32.cont [12/16] 0.0, 128
        %2211 = vxpose.xlu0.b32.cont [13/16] 0.0, 128
        %2212 = vxpose.xlu0.b32.cont [14/16] 0.0, 128
        %2213 = vxpose.xlu0.b32.cont [15/16] 0.0, 128
        %2214 = vxpose.xlu0.b32.end [16/16] 0.0, 128
        %v2215 = vpop.trf.xlu0
        %v2216 = vpop.trf.xlu0
        %v2217 = vpop.trf.xlu0
        %v2218 = vpop.trf.xlu0
        %v2219 = vpop.trf.xlu0
        %v2220 = vpop.trf.xlu0
        %v2221 = vpop.trf.xlu0
        %v2222 = vpop.trf.xlu0
        %v2223 = vpop.trf.xlu0
        %v2224 = vpop.trf.xlu0
        %v2225 = vpop.trf.xlu0
        %v2226 = vpop.trf.xlu0
        %v2227 = vpop.trf.xlu0
        %v2228 = vpop.trf.xlu0
        %v2229 = vpop.trf.xlu0
        %v2230 = vpop.trf.xlu0
        %2231 = vst.msk [vmem:[%s190] sm:$0xff] %vm1758, %v2215
        %s2232 = sand.u32 %s115, 1
        %s2233 = scalar_lea.sflag [#allocation4], %s2232
        %s2234 = sand.u32 %s115, 1
        %s2235 = smul.addr %s2234, 8
        %s2236 = scalar_lea.vmem [#allocation3], %s2235
        // Predicated region
        $region37: #{tpu_custom_call.1} parent=35 // pred_check
          %p2237 = pneg %p125
        $region38: #{tpu_custom_call.1} parent=35 // pred_check_branch
          %2239 = sbr.rel (%p2237) target = $region40
        $region39: #{tpu_custom_call.1} parent=35 // pred_region
          %s2241 = ssub.s32 128, 128
          %2242 = vsyncadd %s2233, %s2241
          %s2243 = smul.addr %s18, 128
          %s2244 = scalar_lea.hbm %s4, %s2243
          %s2246 = sshll.u32 %s2236, 4
          %s2247 = int_to_ptr.vmem [resolvable:$true] %s2246
          %2249 = dma.vmem_to_hbm [thread:$0]  %s2247, 128, %s2244, %s2233
        $region40: #{tpu_custom_call.1} parent=35 // pred_fallthru
          _
      $region36: #{tpu_custom_call.1} parent=5 // pred_fallthru
        _
      %p2250 = scmp.le.s32.totalorder 2, %s13
      // Predicated region
      $region41: #{tpu_custom_call.1} parent=5 // pred_check
        %p2251 = pneg %p2250
      $region42: #{tpu_custom_call.1} parent=5 // pred_check_branch
        %2253 = sbr.rel (%p2251) target = $region44
      $region43: #{tpu_custom_call.1} parent=5 // pred_region
        %s2254 = ssub.s32 %s13, 2
        // Predicated region
        $region45: #{tpu_custom_call.1} parent=43 // pred_check
          %p2255 = pneg %p131
        $region46: #{tpu_custom_call.1} parent=43 // pred_check_branch
          %2257 = sbr.rel (%p2255) target = $region48
        $region47: #{tpu_custom_call.1} parent=43 // pred_region
          %s2258 = sand.u32 %s116, 1
          %s2259 = scalar_lea.sflag [#allocation4], %s2258
          %s2260 = sand.u32 %s116, 1
          %s2261 = smul.addr %s2260, 8
          %s2262 = scalar_lea.vmem [#allocation3], %s2261
          %2263 = dma.done %s2259, 128
        $region48: #{tpu_custom_call.1} parent=43 // pred_fallthru
          _
      $region44: #{tpu_custom_call.1} parent=5 // pred_fallthru
        _
    $region6: #{tpu_custom_call.1} parent=1 // loop_footer
      %s17 = sadd.s32 1, %s13
    $region7: #{tpu_custom_call.1} parent=1 // loop_footer_branch
      %12 = sbr.rel target = $region3
    $region8: #{tpu_custom_call.1} parent=1 // loop_exit
      _
    %2264 = vsyncpa [#allocation4], 1
    %s2265 = scalar_lea.sflag [#allocation4], 1
    %2266 = vsyncpa %s2265, 1

</llo_original>
